<compile_context>
chip_gen: v5e
topology: v5e:2x2
jax: 0.10.0
libtpu: 0.0.40
codegen_flags: <defaults>
</compile_context>

<pallas_src>
import jax
import jax.numpy as jnp
from jax.experimental import pallas as pl
from jax.experimental.pallas import tpu as pltpu


def _concept_head_kernel(cid_ref,            # scalar-prefetch (SMEM), used only by index_maps
                         x_ref,              # (TB, TK)          streaming dtype (f32 or bf16)
                         w1_ref,             # (1, TK, Hh)       streaming dtype
                         b1_ref,             # (1, 1, Hh)        f32
                         w2d_ref,            # (1, 1, Hh)        f32, = W2[:,1] - W2[:,0]
                         b2d_ref,            # (1, 1, 1)         f32, = b2[1]  - b2[0]
                         o_ref,              # (TB, 2)
                         acc_ref):           # (TB, Hh) f32 scratch
    k = pl.program_id(1)

    @pl.when(k == 0)
    def _init():
        # Fold the first-layer bias into the accumulator init (removes a
        # (TB, Hh) VPU add from the epilogue).
        acc_ref[...] = jnp.broadcast_to(
            b1_ref[0].astype(jnp.float32), acc_ref.shape)

    # First projection on the MXU, f32 accumulation across K tiles.
    acc_ref[...] += jnp.dot(x_ref[...], w1_ref[0],
                            preferred_element_type=jnp.float32)

    @pl.when(k == pl.num_programs(1) - 1)
    def _finalize():
        hidden = jnp.maximum(acc_ref[...], 0.0)                      # (TB, Hh) f32
        # Second projection stays OFF the MXU: for a 2-class softmax only the
        # logit difference matters -> VPU multiply + lane reduction.
        d = jnp.sum(hidden * w2d_ref[0], axis=-1, keepdims=True)     # (TB, 1)
        d = d + b2d_ref[0]
        # softmax over 2 classes == sigmoid of the logit difference.
        # Exact reciprocal (EUP, off the matmul critical path).
        p1 = pl.reciprocal(1.0 + jnp.exp(-d), approx=False)          # (TB, 1)
        # Direct column stores (no lane concatenate before the 2-lane store).
        o_ref[:, 0:1] = (1.0 - p1).astype(o_ref.dtype)
        o_ref[:, 1:2] = p1.astype(o_ref.dtype)


def concept_lm_classification(x, W_proj1, b_proj1, W_proj2, b_proj2, concept_id,
                              *, block_b=256,
                              vmem_tile_budget_bytes=20 * 1024 * 1024):
    """x: (B, H); W_proj1: (C, H, H/2); b_proj1: (C, H/2); W_proj2: (C, H/2, 2);
    b_proj2: (C, 2); concept_id: python int or int32 scalar/1-vector.

    Fast path: pass x and W_proj1 as bf16 (f32 accumulation is kept inside the
    kernel); biases / second-layer params are promoted to f32 for the epilogue.
    Returns (B, 2) float32 probabilities."""
    B, H = x.shape
    n_concepts, H_in, Hh = W_proj1.shape
    assert H_in == H and Hh == H // 2
    assert b_proj1.shape == (n_concepts, Hh)
    assert W_proj2.shape == (n_concepts, Hh, 2)
    assert b_proj2.shape == (n_concepts, 2)

    # --- epilogue parameters (tiny; always f32) --------------------------------
    w2d = (W_proj2[..., 1] - W_proj2[..., 0]).astype(jnp.float32)
    w2d = w2d.reshape(n_concepts, 1, Hh)
    b2d = (b_proj2[:, 1] - b_proj2[:, 0]).astype(jnp.float32)
    b2d = b2d.reshape(n_concepts, 1, 1)
    b1r = b_proj1.astype(jnp.float32).reshape(n_concepts, 1, Hh)

    cid = jnp.atleast_1d(jnp.asarray(concept_id, dtype=jnp.int32))
    cid = jnp.clip(cid, 0, n_concepts - 1)   # guard the weight DMA against bad ids

    # --- tile selection --------------------------------------------------------
    x_item = jnp.dtype(x.dtype).itemsize
    w_item = jnp.dtype(W_proj1.dtype).itemsize

    tb = B if B <= block_b else block_b
    assert B % tb == 0 and (tb % 8 == 0 or tb == B), \
        "batch must be a multiple of the batch tile (tile multiple of 8)"

    def _tile_bytes(tk):
        return (2 * tb * tk * x_item          # x block, double-buffered
                + 2 * tk * Hh * w_item        # W1 block, double-buffered
                + tb * Hh * 4                 # f32 accumulator
                + 4 * Hh * 4 + 64             # b1 / w2d / b2d blocks (tiny)
                + 2 * tb * 2 * 4)             # output block

    if _tile_bytes(H) <= vmem_tile_budget_bytes:
        # Whole (H, Hh) weight slice resident: with a single K step the W1
        # block index never changes, so it is fetched from HBM exactly once.
        tk = H
    else:
        tk = None
        for cand in (4096, 2048, 1024, 512, 256, 128):
            if H % cand == 0 and _tile_bytes(cand) <= vmem_tile_budget_bytes:
                tk = cand
                break
        if tk is None:
            tk = 128
        assert H % tk == 0, "hidden size must be a multiple of the K tile"

    grid = (B // tb, H // tk)
    vmem_limit = int(min(max(2 * _tile_bytes(tk), 16 * 1024 * 1024),
                         56 * 1024 * 1024))

    grid_spec = pltpu.PrefetchScalarGridSpec(
        num_scalar_prefetch=1,
        grid=grid,
        in_specs=[
            pl.BlockSpec((tb, tk),    lambda b, k, c: (b, k)),          # x
            pl.BlockSpec((1, tk, Hh), lambda b, k, c: (c[0], k, 0)),    # W_proj1[c]
            pl.BlockSpec((1, 1, Hh),  lambda b, k, c: (c[0], 0, 0)),    # b_proj1[c]
            pl.BlockSpec((1, 1, Hh),  lambda b, k, c: (c[0], 0, 0)),    # w2 diff[c]
            pl.BlockSpec((1, 1, 1),   lambda b, k, c: (c[0], 0, 0)),    # b2 diff[c]
        ],
        out_specs=pl.BlockSpec((tb, 2), lambda b, k, c: (b, 0)),
        scratch_shapes=[pltpu.VMEM((tb, Hh), jnp.float32)],
    )

    return pl.pallas_call(
        _concept_head_kernel,
        out_shape=jax.ShapeDtypeStruct((B, 2), jnp.float32),
        grid_spec=grid_spec,
        compiler_params=pltpu.CompilerParams(
            dimension_semantics=("parallel", "arbitrary"),
            vmem_limit_bytes=vmem_limit),
    )(cid, x, W_proj1, b1r, w2d, b2d)


def _reference(x, W1, b1, W2, b2, c):
    h = jnp.maximum(x.astype(jnp.float32) @ W1[c].astype(jnp.float32) + b1[c], 0.0)
    logits = h @ W2[c] + b2[c]
    return jax.nn.softmax(logits, axis=-1)


if __name__ == "__main__":
    # Shapes consistent with the module: hidden_size=64 -> H/2=32, n_concepts=4.
    # Batch of 256 last-token representations fills an MXU tile and (with the
    # defaults) collapses to a single lane-dense grid step.
    B, H, N_CONCEPTS = 256, 64, 4
    Hh = H // 2

    key = jax.random.PRNGKey(0)
    k_x, k_w1, k_b1, k_w2, k_b2 = jax.random.split(key, 5)

    x = jax.random.normal(k_x, (B, H), dtype=jnp.float32)
    # Module's __init__ uses zeros; use deterministic random values so the
    # computation is non-trivial (shapes match the module exactly).
    W_proj1 = jax.random.normal(k_w1, (N_CONCEPTS, H, Hh), dtype=jnp.float32) * 0.1
    b_proj1 = jax.random.normal(k_b1, (N_CONCEPTS, Hh), dtype=jnp.float32) * 0.1
    W_proj2 = jax.random.normal(k_w2, (N_CONCEPTS, Hh, 2), dtype=jnp.float32) * 0.1
    b_proj2 = jax.random.normal(k_b2, (N_CONCEPTS, 2), dtype=jnp.float32) * 0.1

    concept_id = 2
    ref = _reference(x, W_proj1, b_proj1, W_proj2, b_proj2, concept_id)

    # ---- f32 path (exact) ------------------------------------------------------
    out = concept_lm_classification(x, W_proj1, b_proj1, W_proj2, b_proj2, concept_id)
    out = jax.block_until_ready(out)
    assert out.shape == (B, 2)
    assert jnp.allclose(out, ref, atol=1e-4, rtol=1e-4), (out, ref)
    assert jnp.allclose(jnp.sum(out, axis=-1), 1.0, atol=1e-5)

    # ---- bf16 fast path (pre-cast streamed tensors once, as if params were
    # stored in bf16): halves HBM traffic on the mem-bound weight stream. ------
    out_bf16 = concept_lm_classification(
        x.astype(jnp.bfloat16), W_proj1.astype(jnp.bfloat16),
        b_proj1, W_proj2, b_proj2, concept_id)
    out_bf16 = jax.block_until_ready(out_bf16)
    assert out_bf16.shape == (B, 2)
    assert jnp.allclose(out_bf16, ref, atol=2e-2, rtol=2e-2), (out_bf16, ref)
    assert jnp.allclose(jnp.sum(out_bf16, axis=-1), 1.0, atol=1e-3)

    print("KERNEL_OK")
</pallas_src>

<mosaic_0001>
module attributes {stable_mosaic.version = 11 : i64} {
  func.func @_concept_head_kernel(%arg0: i32, %arg1: i32, %arg2: memref<1xi32, #tpu.memory_space<smem>>, %arg3: memref<256x64xf32, #tpu.memory_space<vmem>>, %arg4: memref<1x64x32xf32, #tpu.memory_space<vmem>>, %arg5: memref<1x1x32xf32, #tpu.memory_space<vmem>>, %arg6: memref<1x1x32xf32, #tpu.memory_space<vmem>>, %arg7: memref<1x1x1xf32, #tpu.memory_space<vmem>>, %arg8: memref<256x2xf32, #tpu.memory_space<vmem>>, %arg9: memref<256x32xf32, #tpu.memory_space<vmem>>) attributes {dimension_semantics = [#tpu.dimension_semantics<parallel>, #tpu.dimension_semantics<arbitrary>], iteration_bounds = array<i64: 1, 1>, scalar_prefetch = 1 : i64, scratch_operands = 1 : i64, tpu.core_type = #tpu.core_type<tc>, window_params = [{transform_indices = @transform_0, window_bounds = array<i64: 256, 64>}, {transform_indices = @transform_1, window_bounds = array<i64: 1, 64, 32>}, {transform_indices = @transform_2, window_bounds = array<i64: 1, 1, 32>}, {transform_indices = @transform_3, window_bounds = array<i64: 1, 1, 32>}, {transform_indices = @transform_4, window_bounds = array<i64: 1, 1, 1>}, {transform_indices = @transform_5, window_bounds = array<i64: 256, 2>}]} {
    %c0_i32 = arith.constant 0 : i32
    %0 = arith.cmpi eq, %arg1, %c0_i32 : i32
    %1 = arith.extui %0 : i1 to i32
    %c0_i32_0 = arith.constant 0 : i32
    %2 = arith.cmpi ne, %1, %c0_i32_0 : i32
    scf.if %2 {
      %c0_11 = arith.constant 0 : index
      %c0_12 = arith.constant 0 : index
      %c0_13 = arith.constant 0 : index
      %13 = vector.load %arg5[%c0_11, %c0_12, %c0_13] : memref<1x1x32xf32, #tpu.memory_space<vmem>>, vector<1x1x32xf32>
      %14 = vector.shape_cast %13 : vector<1x1x32xf32> to vector<1x32xf32>
      %15 = vector.shape_cast %14 : vector<1x32xf32> to vector<1x32xf32>
      %16 = vector.broadcast %15 : vector<1x32xf32> to vector<256x32xf32>
      %c0_14 = arith.constant 0 : index
      %c0_15 = arith.constant 0 : index
      %17 = vector.load %arg9[%c0_14, %c0_15] : memref<256x32xf32, #tpu.memory_space<vmem>>, vector<256x32xf32>
      tpu.vector_store %arg9[%c0_14, %c0_15], %16 {strides = array<i32>} : memref<256x32xf32, #tpu.memory_space<vmem>>, vector<256x32xf32>,
    } else {
    }
    %c0 = arith.constant 0 : index
    %c0_1 = arith.constant 0 : index
    %3 = vector.load %arg9[%c0, %c0_1] : memref<256x32xf32, #tpu.memory_space<vmem>>, vector<256x32xf32>
    %c0_2 = arith.constant 0 : index
    %c0_3 = arith.constant 0 : index
    %4 = vector.load %arg3[%c0_2, %c0_3] : memref<256x64xf32, #tpu.memory_space<vmem>>, vector<256x64xf32>
    %c0_4 = arith.constant 0 : index
    %c0_5 = arith.constant 0 : index
    %c0_6 = arith.constant 0 : index
    %5 = vector.load %arg4[%c0_4, %c0_5, %c0_6] : memref<1x64x32xf32, #tpu.memory_space<vmem>>, vector<1x64x32xf32>
    %6 = vector.shape_cast %5 : vector<1x64x32xf32> to vector<64x32xf32>
    %cst = arith.constant dense<0.000000e+00> : vector<256x32xf32>
    %7 = tpu.matmul %4, %6, %cst {dimension_numbers = #tpu.dot_dimension_numbers<[1], [0], [0], [1], [0, 0, 1, 1], [], []>} : vector<256x64xf32>, vector<64x32xf32>, vector<256x32xf32> -> vector<256x32xf32>
    %8 = arith.addf %3, %7 : vector<256x32xf32>
    %c0_7 = arith.constant 0 : index
    %c0_8 = arith.constant 0 : index
    %9 = vector.load %arg9[%c0_7, %c0_8] : memref<256x32xf32, #tpu.memory_space<vmem>>, vector<256x32xf32>
    tpu.vector_store %arg9[%c0_7, %c0_8], %8 {strides = array<i32>} : memref<256x32xf32, #tpu.memory_space<vmem>>, vector<256x32xf32>,
    %c0_i32_9 = arith.constant 0 : i32
    %10 = arith.cmpi eq, %arg1, %c0_i32_9 : i32
    %11 = arith.extui %10 : i1 to i32
    %c0_i32_10 = arith.constant 0 : i32
    %12 = arith.cmpi ne, %11, %c0_i32_10 : i32
    scf.if %12 {
      %c0_11 = arith.constant 0 : index
      %c0_12 = arith.constant 0 : index
      %13 = vector.load %arg9[%c0_11, %c0_12] : memref<256x32xf32, #tpu.memory_space<vmem>>, vector<256x32xf32>
      %cst_13 = arith.constant 0.000000e+00 : f32
      %14 = vector.broadcast %cst_13 : f32 to vector<256x32xf32>
      %15 = arith.maximumf %13, %14 : vector<256x32xf32>
      %c0_14 = arith.constant 0 : index
      %c0_15 = arith.constant 0 : index
      %c0_16 = arith.constant 0 : index
      %16 = vector.load %arg6[%c0_14, %c0_15, %c0_16] : memref<1x1x32xf32, #tpu.memory_space<vmem>>, vector<1x1x32xf32>
      %17 = vector.shape_cast %16 : vector<1x1x32xf32> to vector<1x32xf32>
      %18 = vector.broadcast %17 : vector<1x32xf32> to vector<256x32xf32>
      %19 = arith.mulf %15, %18 : vector<256x32xf32>
      %cst_17 = arith.constant dense<0.000000e+00> : vector<256xf32>
      %20 = vector.multi_reduction <add>, %19, %cst_17 [1] : vector<256x32xf32> to vector<256xf32>
      %21 = vector.shape_cast %20 : vector<256xf32> to vector<256x1xf32>
      %c0_18 = arith.constant 0 : index
      %c0_19 = arith.constant 0 : index
      %c0_20 = arith.constant 0 : index
      %22 = vector.load %arg7[%c0_18, %c0_19, %c0_20] : memref<1x1x1xf32, #tpu.memory_space<vmem>>, vector<1x1x1xf32>
      %23 = vector.shape_cast %22 : vector<1x1x1xf32> to vector<1x1xf32>
      %24 = vector.broadcast %23 : vector<1x1xf32> to vector<256x1xf32>
      %25 = arith.addf %21, %24 : vector<256x1xf32>
      %cst_21 = arith.constant 0.000000e+00 : f32
      %26 = vector.broadcast %cst_21 : f32 to vector<256x1xf32>
      %27 = arith.subf %26, %25 : vector<256x1xf32>
      %28 = math.exp %27 : vector<256x1xf32>
      %cst_22 = arith.constant 1.000000e+00 : f32
      %29 = vector.broadcast %cst_22 : f32 to vector<256x1xf32>
      %30 = arith.addf %29, %28 : vector<256x1xf32>
      %31 = tpu.reciprocal %30 : vector<256x1xf32> -> vector<256x1xf32>
      %cst_23 = arith.constant 1.000000e+00 : f32
      %32 = vector.broadcast %cst_23 : f32 to vector<256x1xf32>
      %33 = arith.subf %32, %31 : vector<256x1xf32>
      %c0_24 = arith.constant 0 : index
      %c0_25 = arith.constant 0 : index
      %34 = vector.load %arg8[%c0_24, %c0_25] : memref<256x2xf32, #tpu.memory_space<vmem>>, vector<256x1xf32>
      tpu.vector_store %arg8[%c0_24, %c0_25], %33 {strides = array<i32>} : memref<256x2xf32, #tpu.memory_space<vmem>>, vector<256x1xf32>,
      %c0_26 = arith.constant 0 : index
      %c1 = arith.constant 1 : index
      %35 = vector.load %arg8[%c0_26, %c1] : memref<256x2xf32, #tpu.memory_space<vmem>>, vector<256x1xf32>
      tpu.vector_store %arg8[%c0_26, %c1], %31 {strides = array<i32>} : memref<256x2xf32, #tpu.memory_space<vmem>>, vector<256x1xf32>,
    } else {
    }
    return
  }
  func.func @transform_0(%arg0: i32, %arg1: i32, %arg2: memref<1xi32, #tpu.memory_space<smem>>) -> (i32, i32) {
    %c0_i32 = arith.constant 0 : i32
    return %arg0, %arg1 : i32, i32
  }
  func.func @transform_1(%arg0: i32, %arg1: i32, %arg2: memref<1xi32, #tpu.memory_space<smem>>) -> (i32, i32, i32) {
    %c0 = arith.constant 0 : index
    %0 = memref.load %arg2[%c0] : memref<1xi32, #tpu.memory_space<smem>>
    %c0_i32 = arith.constant 0 : i32
    %c0_i32_0 = arith.constant 0 : i32
    return %0, %arg1, %c0_i32 : i32, i32, i32
  }
  func.func @transform_2(%arg0: i32, %arg1: i32, %arg2: memref<1xi32, #tpu.memory_space<smem>>) -> (i32, i32, i32) {
    %c0 = arith.constant 0 : index
    %0 = memref.load %arg2[%c0] : memref<1xi32, #tpu.memory_space<smem>>
    %c0_i32 = arith.constant 0 : i32
    %c0_i32_0 = arith.constant 0 : i32
    %c0_i32_1 = arith.constant 0 : i32
    return %0, %c0_i32, %c0_i32_0 : i32, i32, i32
  }
  func.func @transform_3(%arg0: i32, %arg1: i32, %arg2: memref<1xi32, #tpu.memory_space<smem>>) -> (i32, i32, i32) {
    %c0 = arith.constant 0 : index
    %0 = memref.load %arg2[%c0] : memref<1xi32, #tpu.memory_space<smem>>
    %c0_i32 = arith.constant 0 : i32
    %c0_i32_0 = arith.constant 0 : i32
    %c0_i32_1 = arith.constant 0 : i32
    return %0, %c0_i32, %c0_i32_0 : i32, i32, i32
  }
  func.func @transform_4(%arg0: i32, %arg1: i32, %arg2: memref<1xi32, #tpu.memory_space<smem>>) -> (i32, i32, i32) {
    %c0 = arith.constant 0 : index
    %0 = memref.load %arg2[%c0] : memref<1xi32, #tpu.memory_space<smem>>
    %c0_i32 = arith.constant 0 : i32
    %c0_i32_0 = arith.constant 0 : i32
    %c0_i32_1 = arith.constant 0 : i32
    return %0, %c0_i32, %c0_i32_0 : i32, i32, i32
  }
  func.func @transform_5(%arg0: i32, %arg1: i32, %arg2: memref<1xi32, #tpu.memory_space<smem>>) -> (i32, i32) {
    %c0_i32 = arith.constant 0 : i32
    %c0_i32_0 = arith.constant 0 : i32
    return %arg0, %c0_i32 : i32, i32
  }
}

</mosaic_0001>

<llo_original>
// kernel: tpu_custom_call.1
$region0: #{tpu_custom_call.1}
  #allocation0 [shape = 'u32[]', space=smem, size = 0x4, offset = 0x4, fixed_abs, tag = 'smem constant byte address 0x4 - core index']
  #allocation1 [shape = 'u32[72,128]{1,0:T(1,128)}', space=vmem, size = 0x9000, scoped, tag = 'internal scratch']
  #allocation2 [shape = 'f32[256,32]{1,0:T(8,128)}', space=vmem, size = 0x20000, scoped, tag = 'scratch operand']
  #allocation3 [shape = 's32[1]{0}', space=sflag, size = 0x4, scoped, tag = 'scoped memory for tpu_custom_call.1']
  #allocation4 [shape = 's32[1]{0:T(128)S(6)}', space=smem, size = 0x200, scoped, tag = 'prefetched SMEM operand 0']
  %s0 = inlined_call_operand.<no memory space> [shape: s32[1], index: 0, kind: input, shape index: {}]
  %s1 = inlined_call_operand.vmem [shape: f32[256,64], index: 1, kind: input, shape index: {}]
  %s2 = inlined_call_operand.vmem [shape: f32[4,64,32], index: 2, kind: input, shape index: {}]
  %s3 = inlined_call_operand.vmem [shape: f32[4,1,32], index: 3, kind: input, shape index: {}]
  %s4 = inlined_call_operand.vmem [shape: f32[4,1,32], index: 4, kind: input, shape index: {}]
  %s5 = inlined_call_operand.vmem [shape: f32[4,1,1], index: 5, kind: input, shape index: {}]
  %s6 = inlined_call_operand.vmem [shape: f32[256,2], index: 6, kind: output, shape index: {}]
  %s7 = sld [smem:[#allocation0]]
  $region38: #{tpu_custom_call.1} parent=0
    _
  %s9 = ssub.s32 1, %s7
  %s10 = scalar_select 0, %s9, %s7
  %11 = sst [smem:[#allocation4]] %s0
  // Predicated region
  $region2: #{tpu_custom_call.1} parent=0 // pred_check
    _
  $region3: #{tpu_custom_call.1} parent=0 // pred_check_branch
    %13 = sbr.rel (0) target = $region5
  $region4: #{tpu_custom_call.1} parent=0 // pred_region
    _
  $region5: #{tpu_custom_call.1} parent=0 // pred_fallthru
    _
  // Predicated region
  $region6: #{tpu_custom_call.1} parent=0 // pred_check
    _
  $region7: #{tpu_custom_call.1} parent=0 // pred_check_branch
    %15 = sbr.rel (0) target = $region9
  $region8: #{tpu_custom_call.1} parent=0 // pred_region
    %s16 = sld [smem:[#allocation4]]
    %p17 = scmp.lt.s32.totalorder %s16, 3
    %s18 = scalar_select %p17, %s16, 3
    %s19 = smul.addr %s18, 8
    %s20 = smul.addr %s19, 8
    %s21 = scalar_lea.vmem %s2, %s20
    %s22 = sld [smem:[#allocation4]]
  $region9: #{tpu_custom_call.1} parent=0 // pred_fallthru
    _
  // Predicated region
  $region10: #{tpu_custom_call.1} parent=0 // pred_check
    _
  $region11: #{tpu_custom_call.1} parent=0 // pred_check_branch
    %24 = sbr.rel (0) target = $region13
  $region12: #{tpu_custom_call.1} parent=0 // pred_region
    %s25 = sld [smem:[#allocation4]]
    %p26 = scmp.lt.s32.totalorder %s25, 3
    %s27 = scalar_select %p26, %s25, 3
    %s28 = scalar_lea.vmem %s3, %s27
    %s29 = sld [smem:[#allocation4]]
  $region13: #{tpu_custom_call.1} parent=0 // pred_fallthru
    _
  // Predicated region
  $region14: #{tpu_custom_call.1} parent=0 // pred_check
    _
  $region15: #{tpu_custom_call.1} parent=0 // pred_check_branch
    %31 = sbr.rel (0) target = $region17
  $region16: #{tpu_custom_call.1} parent=0 // pred_region
    %s32 = sld [smem:[#allocation4]]
    %p33 = scmp.lt.s32.totalorder %s32, 3
    %s34 = scalar_select %p33, %s32, 3
    %s35 = scalar_lea.vmem %s4, %s34
    %s36 = sld [smem:[#allocation4]]
  $region17: #{tpu_custom_call.1} parent=0 // pred_fallthru
    _
  // Predicated region
  $region18: #{tpu_custom_call.1} parent=0 // pred_check
    _
  $region19: #{tpu_custom_call.1} parent=0 // pred_check_branch
    %38 = sbr.rel (0) target = $region21
  $region20: #{tpu_custom_call.1} parent=0 // pred_region
    %s39 = sld [smem:[#allocation4]]
    %p40 = scmp.lt.s32.totalorder %s39, 3
    %s41 = scalar_select %p40, %s39, 3
    %s42 = scalar_lea.vmem %s5, %s41
    %s43 = sld [smem:[#allocation4]]
  $region21: #{tpu_custom_call.1} parent=0 // pred_fallthru
    _
  %s44 = sld [smem:[#allocation4]]
  %p45 = scmp.lt.s32.totalorder %s44, 3
  %s46 = scalar_select %p45, %s44, 3
  %s47 = smul.addr %s46, 8
  %s48 = smul.addr %s47, 8
  %s49 = scalar_lea.vmem %s2, %s48
  %s50 = sld [smem:[#allocation4]]
  %p51 = scmp.lt.s32.totalorder %s50, 3
  %s52 = scalar_select %p51, %s50, 3
  %s53 = scalar_lea.vmem %s3, %s52
  %s54 = sld [smem:[#allocation4]]
  %p55 = scmp.lt.s32.totalorder %s54, 3
  %s56 = scalar_select %p55, %s54, 3
  %s57 = scalar_lea.vmem %s4, %s56
  %s58 = sld [smem:[#allocation4]]
  %p59 = scmp.lt.s32.totalorder %s58, 3
  %s60 = scalar_select %p59, %s58, 3
  %s61 = scalar_lea.vmem %s5, %s60
  %s62 = sld [smem:[#allocation4]]
  %p63 = scmp.lt.s32.totalorder %s62, 3
  %s64 = scalar_select %p63, %s62, 3
  %s65 = smul.addr %s64, 8
  %s66 = smul.addr %s65, 8
  %s67 = scalar_lea.vmem %s2, %s66
  %s68 = sld [smem:[#allocation4]]
  %s69 = sld [smem:[#allocation4]]
  %p70 = scmp.lt.s32.totalorder %s69, 3
  %s71 = scalar_select %p70, %s69, 3
  %s72 = scalar_lea.vmem %s3, %s71
  %s73 = sld [smem:[#allocation4]]
  %s74 = sld [smem:[#allocation4]]
  %p75 = scmp.lt.s32.totalorder %s74, 3
  %s76 = scalar_select %p75, %s74, 3
  %s77 = scalar_lea.vmem %s4, %s76
  %s78 = sld [smem:[#allocation4]]
  %s79 = sld [smem:[#allocation4]]
  %p80 = scmp.lt.s32.totalorder %s79, 3
  %s81 = scalar_select %p80, %s79, 3
  %s82 = scalar_lea.vmem %s5, %s81
  %s83 = sld [smem:[#allocation4]]
  %p84 = scmp.eq.s32.totalorder 0, 0
  // Predicated region
  $region22: #{tpu_custom_call.1} parent=0 // pred_check
    %p85 = pneg %p84
  $region23: #{tpu_custom_call.1} parent=0 // pred_check_branch
    %87 = sbr.rel (%p85) target = $region25
  $region24: #{tpu_custom_call.1} parent=0 // pred_region
    %v88 = vld [vmem:[%s72] sm:$0x1]
    %v90 = vperm.slane %v88, 0
    %vm92 = vcmask 261120
    %93 = vst.msk [vmem:[#allocation2] sm:$0xff] %vm92, %v90
    %94 = vst.msk [vmem:[#allocation2 + $0x8] sm:$0xff] %vm92, %v90
    %95 = vst.msk [vmem:[#allocation2 + $0x10] sm:$0xff] %vm92, %v90
    %96 = vst.msk [vmem:[#allocation2 + $0x18] sm:$0xff] %vm92, %v90
    %97 = vst.msk [vmem:[#allocation2 + $0x20] sm:$0xff] %vm92, %v90
    %98 = vst.msk [vmem:[#allocation2 + $0x28] sm:$0xff] %vm92, %v90
    %99 = vst.msk [vmem:[#allocation2 + $0x30] sm:$0xff] %vm92, %v90
    %100 = vst.msk [vmem:[#allocation2 + $0x38] sm:$0xff] %vm92, %v90
    %101 = vst.msk [vmem:[#allocation2 + $0x40] sm:$0xff] %vm92, %v90
    %102 = vst.msk [vmem:[#allocation2 + $0x48] sm:$0xff] %vm92, %v90
    %103 = vst.msk [vmem:[#allocation2 + $0x50] sm:$0xff] %vm92, %v90
    %104 = vst.msk [vmem:[#allocation2 + $0x58] sm:$0xff] %vm92, %v90
    %105 = vst.msk [vmem:[#allocation2 + $0x60] sm:$0xff] %vm92, %v90
    %106 = vst.msk [vmem:[#allocation2 + $0x68] sm:$0xff] %vm92, %v90
    %107 = vst.msk [vmem:[#allocation2 + $0x70] sm:$0xff] %vm92, %v90
    %108 = vst.msk [vmem:[#allocation2 + $0x78] sm:$0xff] %vm92, %v90
    %109 = vst.msk [vmem:[#allocation2 + $0x80] sm:$0xff] %vm92, %v90
    %110 = vst.msk [vmem:[#allocation2 + $0x88] sm:$0xff] %vm92, %v90
    %111 = vst.msk [vmem:[#allocation2 + $0x90] sm:$0xff] %vm92, %v90
    %112 = vst.msk [vmem:[#allocation2 + $0x98] sm:$0xff] %vm92, %v90
    %113 = vst.msk [vmem:[#allocation2 + $0xa0] sm:$0xff] %vm92, %v90
    %114 = vst.msk [vmem:[#allocation2 + $0xa8] sm:$0xff] %vm92, %v90
    %115 = vst.msk [vmem:[#allocation2 + $0xb0] sm:$0xff] %vm92, %v90
    %116 = vst.msk [vmem:[#allocation2 + $0xb8] sm:$0xff] %vm92, %v90
    %117 = vst.msk [vmem:[#allocation2 + $0xc0] sm:$0xff] %vm92, %v90
    %118 = vst.msk [vmem:[#allocation2 + $0xc8] sm:$0xff] %vm92, %v90
    %119 = vst.msk [vmem:[#allocation2 + $0xd0] sm:$0xff] %vm92, %v90
    %120 = vst.msk [vmem:[#allocation2 + $0xd8] sm:$0xff] %vm92, %v90
    %121 = vst.msk [vmem:[#allocation2 + $0xe0] sm:$0xff] %vm92, %v90
    %122 = vst.msk [vmem:[#allocation2 + $0xe8] sm:$0xff] %vm92, %v90
    %123 = vst.msk [vmem:[#allocation2 + $0xf0] sm:$0xff] %vm92, %v90
    %124 = vst.msk [vmem:[#allocation2 + $0xf8] sm:$0xff] %vm92, %v90
  $region25: #{tpu_custom_call.1} parent=0 // pred_fallthru
    _
  %v125 = vld [vmem:[#allocation2] sm:$0xff]
  %v126 = vld [vmem:[#allocation2 + $0x8] sm:$0xff]
  %v127 = vld [vmem:[#allocation2 + $0x10] sm:$0xff]
  %v128 = vld [vmem:[#allocation2 + $0x18] sm:$0xff]
  %v129 = vld [vmem:[#allocation2 + $0x20] sm:$0xff]
  %v130 = vld [vmem:[#allocation2 + $0x28] sm:$0xff]
  %v131 = vld [vmem:[#allocation2 + $0x30] sm:$0xff]
  %v132 = vld [vmem:[#allocation2 + $0x38] sm:$0xff]
  %v133 = vld [vmem:[#allocation2 + $0x40] sm:$0xff]
  %v134 = vld [vmem:[#allocation2 + $0x48] sm:$0xff]
  %v135 = vld [vmem:[#allocation2 + $0x50] sm:$0xff]
  %v136 = vld [vmem:[#allocation2 + $0x58] sm:$0xff]
  %v137 = vld [vmem:[#allocation2 + $0x60] sm:$0xff]
  %v138 = vld [vmem:[#allocation2 + $0x68] sm:$0xff]
  %v139 = vld [vmem:[#allocation2 + $0x70] sm:$0xff]
  %v140 = vld [vmem:[#allocation2 + $0x78] sm:$0xff]
  %v141 = vld [vmem:[#allocation2 + $0x80] sm:$0xff]
  %v142 = vld [vmem:[#allocation2 + $0x88] sm:$0xff]
  %v143 = vld [vmem:[#allocation2 + $0x90] sm:$0xff]
  %v144 = vld [vmem:[#allocation2 + $0x98] sm:$0xff]
  %v145 = vld [vmem:[#allocation2 + $0xa0] sm:$0xff]
  %v146 = vld [vmem:[#allocation2 + $0xa8] sm:$0xff]
  %v147 = vld [vmem:[#allocation2 + $0xb0] sm:$0xff]
  %v148 = vld [vmem:[#allocation2 + $0xb8] sm:$0xff]
  %v149 = vld [vmem:[#allocation2 + $0xc0] sm:$0xff]
  %v150 = vld [vmem:[#allocation2 + $0xc8] sm:$0xff]
  %v151 = vld [vmem:[#allocation2 + $0xd0] sm:$0xff]
  %v152 = vld [vmem:[#allocation2 + $0xd8] sm:$0xff]
  %v153 = vld [vmem:[#allocation2 + $0xe0] sm:$0xff]
  %v154 = vld [vmem:[#allocation2 + $0xe8] sm:$0xff]
  %v155 = vld [vmem:[#allocation2 + $0xf0] sm:$0xff]
  %v156 = vld [vmem:[#allocation2 + $0xf8] sm:$0xff]
  %v157 = vld [vmem:[%s1] sm:$0xff]
  %v158 = vld [vmem:[%s1 + $0x8] sm:$0xff]
  %v159 = vld [vmem:[%s1 + $0x10] sm:$0xff]
  %v160 = vld [vmem:[%s1 + $0x18] sm:$0xff]
  %v161 = vld [vmem:[%s1 + $0x20] sm:$0xff]
  %v162 = vld [vmem:[%s1 + $0x28] sm:$0xff]
  %v163 = vld [vmem:[%s1 + $0x30] sm:$0xff]
  %v164 = vld [vmem:[%s1 + $0x38] sm:$0xff]
  %v165 = vld [vmem:[%s1 + $0x40] sm:$0xff]
  %v166 = vld [vmem:[%s1 + $0x48] sm:$0xff]
  %v167 = vld [vmem:[%s1 + $0x50] sm:$0xff]
  %v168 = vld [vmem:[%s1 + $0x58] sm:$0xff]
  %v169 = vld [vmem:[%s1 + $0x60] sm:$0xff]
  %v170 = vld [vmem:[%s1 + $0x68] sm:$0xff]
  %v171 = vld [vmem:[%s1 + $0x70] sm:$0xff]
  %v172 = vld [vmem:[%s1 + $0x78] sm:$0xff]
  %v173 = vld [vmem:[%s1 + $0x80] sm:$0xff]
  %v174 = vld [vmem:[%s1 + $0x88] sm:$0xff]
  %v175 = vld [vmem:[%s1 + $0x90] sm:$0xff]
  %v176 = vld [vmem:[%s1 + $0x98] sm:$0xff]
  %v177 = vld [vmem:[%s1 + $0xa0] sm:$0xff]
  %v178 = vld [vmem:[%s1 + $0xa8] sm:$0xff]
  %v179 = vld [vmem:[%s1 + $0xb0] sm:$0xff]
  %v180 = vld [vmem:[%s1 + $0xb8] sm:$0xff]
  %v181 = vld [vmem:[%s1 + $0xc0] sm:$0xff]
  %v182 = vld [vmem:[%s1 + $0xc8] sm:$0xff]
  %v183 = vld [vmem:[%s1 + $0xd0] sm:$0xff]
  %v184 = vld [vmem:[%s1 + $0xd8] sm:$0xff]
  %v185 = vld [vmem:[%s1 + $0xe0] sm:$0xff]
  %v186 = vld [vmem:[%s1 + $0xe8] sm:$0xff]
  %v187 = vld [vmem:[%s1 + $0xf0] sm:$0xff]
  %v188 = vld [vmem:[%s1 + $0xf8] sm:$0xff]
  %v189 = vld [vmem:[%s67] sm:$0xff]
  %v190 = vld [vmem:[%s67 + $0x8] sm:$0xff]
  %v191 = vld [vmem:[%s67 + $0x10] sm:$0xff]
  %v192 = vld [vmem:[%s67 + $0x18] sm:$0xff]
  %v193 = vld [vmem:[%s67 + $0x20] sm:$0xff]
  %v194 = vld [vmem:[%s67 + $0x28] sm:$0xff]
  %v195 = vld [vmem:[%s67 + $0x30] sm:$0xff]
  %v196 = vld [vmem:[%s67 + $0x38] sm:$0xff]
  %vm197 = vcmask 523264
  %v199 = vsel %vm197, %v157, 0
  %v202 = vsel %vm197, %v158, 0
  %v205 = vsel %vm197, %v159, 0
  %v208 = vsel %vm197, %v160, 0
  %v211 = vsel %vm197, %v161, 0
  %v214 = vsel %vm197, %v162, 0
  %v217 = vsel %vm197, %v163, 0
  %v220 = vsel %vm197, %v164, 0
  %v223 = vsel %vm197, %v165, 0
  %v226 = vsel %vm197, %v166, 0
  %v229 = vsel %vm197, %v167, 0
  %v232 = vsel %vm197, %v168, 0
  %v235 = vsel %vm197, %v169, 0
  %v238 = vsel %vm197, %v170, 0
  %v241 = vsel %vm197, %v171, 0
  %v244 = vsel %vm197, %v172, 0
  %v247 = vsel %vm197, %v173, 0
  %v250 = vsel %vm197, %v174, 0
  %v253 = vsel %vm197, %v175, 0
  %v256 = vsel %vm197, %v176, 0
  %v259 = vsel %vm197, %v177, 0
  %v262 = vsel %vm197, %v178, 0
  %v265 = vsel %vm197, %v179, 0
  %v268 = vsel %vm197, %v180, 0
  %v271 = vsel %vm197, %v181, 0
  %v274 = vsel %vm197, %v182, 0
  %v277 = vsel %vm197, %v183, 0
  %v280 = vsel %vm197, %v184, 0
  %v283 = vsel %vm197, %v185, 0
  %v286 = vsel %vm197, %v186, 0
  %v289 = vsel %vm197, %v187, 0
  %v292 = vsel %vm197, %v188, 0
  %294 = vmatpush.msra.mxu0 0.0
  %295 = vmatpush.msra.mxu0 0.0
  %296 = vmatpush.msra.mxu0 0.0
  %297 = vmatpush.msra.mxu0 0.0
  %298 = vmatpush.msra.mxu0 0.0
  %299 = vmatpush.msra.mxu0 0.0
  %300 = vmatpush.msra.mxu0 0.0
  %301 = vmatpush.msra.mxu0 0.0
  %302 = vmatpush.msra.mxu0 %v196
  %303 = vmatpush.msra.mxu0 %v195
  %304 = vmatpush.msra.mxu0 %v194
  %305 = vmatpush.msra.mxu0 %v193
  %306 = vmatpush.msra.mxu0 %v192
  %307 = vmatpush.msra.mxu0 %v191
  %308 = vmatpush.msra.mxu0 %v190
  %309 = vmatpush.msra.mxu0 %v189
  %310 = vmatmul.f32.gmra.mxu0 %v199
  %v311 = vpop.f32.mrf.mxu0
  %v312 = vadd.f32 0.0, %v311
  %313 = vmatmul.f32.gmra.mxu0 %v202
  %v314 = vpop.f32.mrf.mxu0
  %v315 = vadd.f32 0.0, %v314
  %316 = vmatmul.f32.gmra.mxu0 %v205
  %v317 = vpop.f32.mrf.mxu0
  %v318 = vadd.f32 0.0, %v317
  %319 = vmatmul.f32.gmra.mxu0 %v208
  %v320 = vpop.f32.mrf.mxu0
  %v321 = vadd.f32 0.0, %v320
  %322 = vmatmul.f32.gmra.mxu0 %v211
  %v323 = vpop.f32.mrf.mxu0
  %v324 = vadd.f32 0.0, %v323
  %325 = vmatmul.f32.gmra.mxu0 %v214
  %v326 = vpop.f32.mrf.mxu0
  %v327 = vadd.f32 0.0, %v326
  %328 = vmatmul.f32.gmra.mxu0 %v217
  %v329 = vpop.f32.mrf.mxu0
  %v330 = vadd.f32 0.0, %v329
  %331 = vmatmul.f32.gmra.mxu0 %v220
  %v332 = vpop.f32.mrf.mxu0
  %v333 = vadd.f32 0.0, %v332
  %334 = vmatmul.f32.gmra.mxu0 %v223
  %v335 = vpop.f32.mrf.mxu0
  %v336 = vadd.f32 0.0, %v335
  %337 = vmatmul.f32.gmra.mxu0 %v226
  %v338 = vpop.f32.mrf.mxu0
  %v339 = vadd.f32 0.0, %v338
  %340 = vmatmul.f32.gmra.mxu0 %v229
  %v341 = vpop.f32.mrf.mxu0
  %v342 = vadd.f32 0.0, %v341
  %343 = vmatmul.f32.gmra.mxu0 %v232
  %v344 = vpop.f32.mrf.mxu0
  %v345 = vadd.f32 0.0, %v344
  %346 = vmatmul.f32.gmra.mxu0 %v235
  %v347 = vpop.f32.mrf.mxu0
  %v348 = vadd.f32 0.0, %v347
  %349 = vmatmul.f32.gmra.mxu0 %v238
  %v350 = vpop.f32.mrf.mxu0
  %v351 = vadd.f32 0.0, %v350
  %352 = vmatmul.f32.gmra.mxu0 %v241
  %v353 = vpop.f32.mrf.mxu0
  %v354 = vadd.f32 0.0, %v353
  %355 = vmatmul.f32.gmra.mxu0 %v244
  %v356 = vpop.f32.mrf.mxu0
  %v357 = vadd.f32 0.0, %v356
  %358 = vmatmul.f32.gmra.mxu0 %v247
  %v359 = vpop.f32.mrf.mxu0
  %v360 = vadd.f32 0.0, %v359
  %361 = vmatmul.f32.gmra.mxu0 %v250
  %v362 = vpop.f32.mrf.mxu0
  %v363 = vadd.f32 0.0, %v362
  %364 = vmatmul.f32.gmra.mxu0 %v253
  %v365 = vpop.f32.mrf.mxu0
  %v366 = vadd.f32 0.0, %v365
  %367 = vmatmul.f32.gmra.mxu0 %v256
  %v368 = vpop.f32.mrf.mxu0
  %v369 = vadd.f32 0.0, %v368
  %370 = vmatmul.f32.gmra.mxu0 %v259
  %v371 = vpop.f32.mrf.mxu0
  %v372 = vadd.f32 0.0, %v371
  %373 = vmatmul.f32.gmra.mxu0 %v262
  %v374 = vpop.f32.mrf.mxu0
  %v375 = vadd.f32 0.0, %v374
  %376 = vmatmul.f32.gmra.mxu0 %v265
  %v377 = vpop.f32.mrf.mxu0
  %v378 = vadd.f32 0.0, %v377
  %379 = vmatmul.f32.gmra.mxu0 %v268
  %v380 = vpop.f32.mrf.mxu0
  %v381 = vadd.f32 0.0, %v380
  %382 = vmatmul.f32.gmra.mxu0 %v271
  %v383 = vpop.f32.mrf.mxu0
  %v384 = vadd.f32 0.0, %v383
  %385 = vmatmul.f32.gmra.mxu0 %v274
  %v386 = vpop.f32.mrf.mxu0
  %v387 = vadd.f32 0.0, %v386
  %388 = vmatmul.f32.gmra.mxu0 %v277
  %v389 = vpop.f32.mrf.mxu0
  %v390 = vadd.f32 0.0, %v389
  %391 = vmatmul.f32.gmra.mxu0 %v280
  %v392 = vpop.f32.mrf.mxu0
  %v393 = vadd.f32 0.0, %v392
  %394 = vmatmul.f32.gmra.mxu0 %v283
  %v395 = vpop.f32.mrf.mxu0
  %v396 = vadd.f32 0.0, %v395
  %397 = vmatmul.f32.gmra.mxu0 %v286
  %v398 = vpop.f32.mrf.mxu0
  %v399 = vadd.f32 0.0, %v398
  %400 = vmatmul.f32.gmra.mxu0 %v289
  %v401 = vpop.f32.mrf.mxu0
  %v402 = vadd.f32 0.0, %v401
  %403 = vmatmul.f32.gmra.mxu0 %v292
  %v404 = vpop.f32.mrf.mxu0
  %v405 = vadd.f32 0.0, %v404
  %406 = vdwg.mxu0
  %v407 = vadd.f32 %v125, %v312
  %v408 = vadd.f32 %v126, %v315
  %v409 = vadd.f32 %v127, %v318
  %v410 = vadd.f32 %v128, %v321
  %v411 = vadd.f32 %v129, %v324
  %v412 = vadd.f32 %v130, %v327
  %v413 = vadd.f32 %v131, %v330
  %v414 = vadd.f32 %v132, %v333
  %v415 = vadd.f32 %v133, %v336
  %v416 = vadd.f32 %v134, %v339
  %v417 = vadd.f32 %v135, %v342
  %v418 = vadd.f32 %v136, %v345
  %v419 = vadd.f32 %v137, %v348
  %v420 = vadd.f32 %v138, %v351
  %v421 = vadd.f32 %v139, %v354
  %v422 = vadd.f32 %v140, %v357
  %v423 = vadd.f32 %v141, %v360
  %v424 = vadd.f32 %v142, %v363
  %v425 = vadd.f32 %v143, %v366
  %v426 = vadd.f32 %v144, %v369
  %v427 = vadd.f32 %v145, %v372
  %v428 = vadd.f32 %v146, %v375
  %v429 = vadd.f32 %v147, %v378
  %v430 = vadd.f32 %v148, %v381
  %v431 = vadd.f32 %v149, %v384
  %v432 = vadd.f32 %v150, %v387
  %v433 = vadd.f32 %v151, %v390
  %v434 = vadd.f32 %v152, %v393
  %v435 = vadd.f32 %v153, %v396
  %v436 = vadd.f32 %v154, %v399
  %v437 = vadd.f32 %v155, %v402
  %v438 = vadd.f32 %v156, %v405
  %vm439 = vcmask 261120
  %440 = vst.msk [vmem:[#allocation2] sm:$0xff] %vm439, %v407
  %441 = vst.msk [vmem:[#allocation2 + $0x8] sm:$0xff] %vm439, %v408
  %442 = vst.msk [vmem:[#allocation2 + $0x10] sm:$0xff] %vm439, %v409
  %443 = vst.msk [vmem:[#allocation2 + $0x18] sm:$0xff] %vm439, %v410
  %444 = vst.msk [vmem:[#allocation2 + $0x20] sm:$0xff] %vm439, %v411
  %445 = vst.msk [vmem:[#allocation2 + $0x28] sm:$0xff] %vm439, %v412
  %446 = vst.msk [vmem:[#allocation2 + $0x30] sm:$0xff] %vm439, %v413
  %447 = vst.msk [vmem:[#allocation2 + $0x38] sm:$0xff] %vm439, %v414
  %448 = vst.msk [vmem:[#allocation2 + $0x40] sm:$0xff] %vm439, %v415
  %449 = vst.msk [vmem:[#allocation2 + $0x48] sm:$0xff] %vm439, %v416
  %450 = vst.msk [vmem:[#allocation2 + $0x50] sm:$0xff] %vm439, %v417
  %451 = vst.msk [vmem:[#allocation2 + $0x58] sm:$0xff] %vm439, %v418
  %452 = vst.msk [vmem:[#allocation2 + $0x60] sm:$0xff] %vm439, %v419
  %453 = vst.msk [vmem:[#allocation2 + $0x68] sm:$0xff] %vm439, %v420
  %454 = vst.msk [vmem:[#allocation2 + $0x70] sm:$0xff] %vm439, %v421
  %455 = vst.msk [vmem:[#allocation2 + $0x78] sm:$0xff] %vm439, %v422
  %456 = vst.msk [vmem:[#allocation2 + $0x80] sm:$0xff] %vm439, %v423
  %457 = vst.msk [vmem:[#allocation2 + $0x88] sm:$0xff] %vm439, %v424
  %458 = vst.msk [vmem:[#allocation2 + $0x90] sm:$0xff] %vm439, %v425
  %459 = vst.msk [vmem:[#allocation2 + $0x98] sm:$0xff] %vm439, %v426
  %460 = vst.msk [vmem:[#allocation2 + $0xa0] sm:$0xff] %vm439, %v427
  %461 = vst.msk [vmem:[#allocation2 + $0xa8] sm:$0xff] %vm439, %v428
  %462 = vst.msk [vmem:[#allocation2 + $0xb0] sm:$0xff] %vm439, %v429
  %463 = vst.msk [vmem:[#allocation2 + $0xb8] sm:$0xff] %vm439, %v430
  %464 = vst.msk [vmem:[#allocation2 + $0xc0] sm:$0xff] %vm439, %v431
  %465 = vst.msk [vmem:[#allocation2 + $0xc8] sm:$0xff] %vm439, %v432
  %466 = vst.msk [vmem:[#allocation2 + $0xd0] sm:$0xff] %vm439, %v433
  %467 = vst.msk [vmem:[#allocation2 + $0xd8] sm:$0xff] %vm439, %v434
  %468 = vst.msk [vmem:[#allocation2 + $0xe0] sm:$0xff] %vm439, %v435
  %469 = vst.msk [vmem:[#allocation2 + $0xe8] sm:$0xff] %vm439, %v436
  %470 = vst.msk [vmem:[#allocation2 + $0xf0] sm:$0xff] %vm439, %v437
  %471 = vst.msk [vmem:[#allocation2 + $0xf8] sm:$0xff] %vm439, %v438
  // Predicated region
  $region26: #{tpu_custom_call.1} parent=0 // pred_check
    %p472 = pneg %p84
  $region27: #{tpu_custom_call.1} parent=0 // pred_check_branch
    %474 = sbr.rel (%p472) target = $region29
  $region28: #{tpu_custom_call.1} parent=0 // pred_region
    %v475 = vld [vmem:[#allocation2] sm:$0xff]
    %v476 = vld [vmem:[#allocation2 + $0x8] sm:$0xff]
    %v477 = vld [vmem:[#allocation2 + $0x10] sm:$0xff]
    %v478 = vld [vmem:[#allocation2 + $0x18] sm:$0xff]
    %v479 = vld [vmem:[#allocation2 + $0x20] sm:$0xff]
    %v480 = vld [vmem:[#allocation2 + $0x28] sm:$0xff]
    %v481 = vld [vmem:[#allocation2 + $0x30] sm:$0xff]
    %v482 = vld [vmem:[#allocation2 + $0x38] sm:$0xff]
    %v483 = vld [vmem:[#allocation2 + $0x40] sm:$0xff]
    %v484 = vld [vmem:[#allocation2 + $0x48] sm:$0xff]
    %v485 = vld [vmem:[#allocation2 + $0x50] sm:$0xff]
    %v486 = vld [vmem:[#allocation2 + $0x58] sm:$0xff]
    %v487 = vld [vmem:[#allocation2 + $0x60] sm:$0xff]
    %v488 = vld [vmem:[#allocation2 + $0x68] sm:$0xff]
    %v489 = vld [vmem:[#allocation2 + $0x70] sm:$0xff]
    %v490 = vld [vmem:[#allocation2 + $0x78] sm:$0xff]
    %v491 = vld [vmem:[#allocation2 + $0x80] sm:$0xff]
    %v492 = vld [vmem:[#allocation2 + $0x88] sm:$0xff]
    %v493 = vld [vmem:[#allocation2 + $0x90] sm:$0xff]
    %v494 = vld [vmem:[#allocation2 + $0x98] sm:$0xff]
    %v495 = vld [vmem:[#allocation2 + $0xa0] sm:$0xff]
    %v496 = vld [vmem:[#allocation2 + $0xa8] sm:$0xff]
    %v497 = vld [vmem:[#allocation2 + $0xb0] sm:$0xff]
    %v498 = vld [vmem:[#allocation2 + $0xb8] sm:$0xff]
    %v499 = vld [vmem:[#allocation2 + $0xc0] sm:$0xff]
    %v500 = vld [vmem:[#allocation2 + $0xc8] sm:$0xff]
    %v501 = vld [vmem:[#allocation2 + $0xd0] sm:$0xff]
    %v502 = vld [vmem:[#allocation2 + $0xd8] sm:$0xff]
    %v503 = vld [vmem:[#allocation2 + $0xe0] sm:$0xff]
    %v504 = vld [vmem:[#allocation2 + $0xe8] sm:$0xff]
    %v505 = vld [vmem:[#allocation2 + $0xf0] sm:$0xff]
    %v506 = vld [vmem:[#allocation2 + $0xf8] sm:$0xff]
    %v507 = vmax.f32 %v475, 0.0
    %v508 = vmax.f32 %v476, 0.0
    %v509 = vmax.f32 %v477, 0.0
    %v510 = vmax.f32 %v478, 0.0
    %v511 = vmax.f32 %v479, 0.0
    %v512 = vmax.f32 %v480, 0.0
    %v513 = vmax.f32 %v481, 0.0
    %v514 = vmax.f32 %v482, 0.0
    %v515 = vmax.f32 %v483, 0.0
    %v516 = vmax.f32 %v484, 0.0
    %v517 = vmax.f32 %v485, 0.0
    %v518 = vmax.f32 %v486, 0.0
    %v519 = vmax.f32 %v487, 0.0
    %v520 = vmax.f32 %v488, 0.0
    %v521 = vmax.f32 %v489, 0.0
    %v522 = vmax.f32 %v490, 0.0
    %v523 = vmax.f32 %v491, 0.0
    %v524 = vmax.f32 %v492, 0.0
    %v525 = vmax.f32 %v493, 0.0
    %v526 = vmax.f32 %v494, 0.0
    %v527 = vmax.f32 %v495, 0.0
    %v528 = vmax.f32 %v496, 0.0
    %v529 = vmax.f32 %v497, 0.0
    %v530 = vmax.f32 %v498, 0.0
    %v531 = vmax.f32 %v499, 0.0
    %v532 = vmax.f32 %v500, 0.0
    %v533 = vmax.f32 %v501, 0.0
    %v534 = vmax.f32 %v502, 0.0
    %v535 = vmax.f32 %v503, 0.0
    %v536 = vmax.f32 %v504, 0.0
    %v537 = vmax.f32 %v505, 0.0
    %v538 = vmax.f32 %v506, 0.0
    %v539 = vld [vmem:[%s77] sm:$0x1]
    %v541 = vperm.slane %v539, 0
    %v543 = vmul.f32 %v507, %v541
    %v544 = vmul.f32 %v508, %v541
    %v545 = vmul.f32 %v509, %v541
    %v546 = vmul.f32 %v510, %v541
    %v547 = vmul.f32 %v511, %v541
    %v548 = vmul.f32 %v512, %v541
    %v549 = vmul.f32 %v513, %v541
    %v550 = vmul.f32 %v514, %v541
    %v551 = vmul.f32 %v515, %v541
    %v552 = vmul.f32 %v516, %v541
    %v553 = vmul.f32 %v517, %v541
    %v554 = vmul.f32 %v518, %v541
    %v555 = vmul.f32 %v519, %v541
    %v556 = vmul.f32 %v520, %v541
    %v557 = vmul.f32 %v521, %v541
    %v558 = vmul.f32 %v522, %v541
    %v559 = vmul.f32 %v523, %v541
    %v560 = vmul.f32 %v524, %v541
    %v561 = vmul.f32 %v525, %v541
    %v562 = vmul.f32 %v526, %v541
    %v563 = vmul.f32 %v527, %v541
    %v564 = vmul.f32 %v528, %v541
    %v565 = vmul.f32 %v529, %v541
    %v566 = vmul.f32 %v530, %v541
    %v567 = vmul.f32 %v531, %v541
    %v568 = vmul.f32 %v532, %v541
    %v569 = vmul.f32 %v533, %v541
    %v570 = vmul.f32 %v534, %v541
    %v571 = vmul.f32 %v535, %v541
    %v572 = vmul.f32 %v536, %v541
    %v573 = vmul.f32 %v537, %v541
    %v574 = vmul.f32 %v538, %v541
    %v575 = vsel %vm439, %v543, 0.0
    %576 = vadd.xlane.f32.xlu0 %v575
    %v577 = vpop.xlane.xlu0 %576
    %v578 = vsel %vm439, %v544, 0.0
    %579 = vadd.xlane.f32.xlu0 %v578
    %v580 = vpop.xlane.xlu0 %579
    %v581 = vsel %vm439, %v545, 0.0
    %582 = vadd.xlane.f32.xlu0 %v581
    %v583 = vpop.xlane.xlu0 %582
    %v584 = vsel %vm439, %v546, 0.0
    %585 = vadd.xlane.f32.xlu0 %v584
    %v586 = vpop.xlane.xlu0 %585
    %v587 = vsel %vm439, %v547, 0.0
    %588 = vadd.xlane.f32.xlu0 %v587
    %v589 = vpop.xlane.xlu0 %588
    %v590 = vsel %vm439, %v548, 0.0
    %591 = vadd.xlane.f32.xlu0 %v590
    %v592 = vpop.xlane.xlu0 %591
    %v593 = vsel %vm439, %v549, 0.0
    %594 = vadd.xlane.f32.xlu0 %v593
    %v595 = vpop.xlane.xlu0 %594
    %v596 = vsel %vm439, %v550, 0.0
    %597 = vadd.xlane.f32.xlu0 %v596
    %v598 = vpop.xlane.xlu0 %597
    %v599 = vsel %vm439, %v551, 0.0
    %600 = vadd.xlane.f32.xlu0 %v599
    %v601 = vpop.xlane.xlu0 %600
    %v602 = vsel %vm439, %v552, 0.0
    %603 = vadd.xlane.f32.xlu0 %v602
    %v604 = vpop.xlane.xlu0 %603
    %v605 = vsel %vm439, %v553, 0.0
    %606 = vadd.xlane.f32.xlu0 %v605
    %v607 = vpop.xlane.xlu0 %606
    %v608 = vsel %vm439, %v554, 0.0
    %609 = vadd.xlane.f32.xlu0 %v608
    %v610 = vpop.xlane.xlu0 %609
    %v611 = vsel %vm439, %v555, 0.0
    %612 = vadd.xlane.f32.xlu0 %v611
    %v613 = vpop.xlane.xlu0 %612
    %v614 = vsel %vm439, %v556, 0.0
    %615 = vadd.xlane.f32.xlu0 %v614
    %v616 = vpop.xlane.xlu0 %615
    %v617 = vsel %vm439, %v557, 0.0
    %618 = vadd.xlane.f32.xlu0 %v617
    %v619 = vpop.xlane.xlu0 %618
    %v620 = vsel %vm439, %v558, 0.0
    %621 = vadd.xlane.f32.xlu0 %v620
    %v622 = vpop.xlane.xlu0 %621
    %v623 = vsel %vm439, %v559, 0.0
    %624 = vadd.xlane.f32.xlu0 %v623
    %v625 = vpop.xlane.xlu0 %624
    %v626 = vsel %vm439, %v560, 0.0
    %627 = vadd.xlane.f32.xlu0 %v626
    %v628 = vpop.xlane.xlu0 %627
    %v629 = vsel %vm439, %v561, 0.0
    %630 = vadd.xlane.f32.xlu0 %v629
    %v631 = vpop.xlane.xlu0 %630
    %v632 = vsel %vm439, %v562, 0.0
    %633 = vadd.xlane.f32.xlu0 %v632
    %v634 = vpop.xlane.xlu0 %633
    %v635 = vsel %vm439, %v563, 0.0
    %636 = vadd.xlane.f32.xlu0 %v635
    %v637 = vpop.xlane.xlu0 %636
    %v638 = vsel %vm439, %v564, 0.0
    %639 = vadd.xlane.f32.xlu0 %v638
    %v640 = vpop.xlane.xlu0 %639
    %v641 = vsel %vm439, %v565, 0.0
    %642 = vadd.xlane.f32.xlu0 %v641
    %v643 = vpop.xlane.xlu0 %642
    %v644 = vsel %vm439, %v566, 0.0
    %645 = vadd.xlane.f32.xlu0 %v644
    %v646 = vpop.xlane.xlu0 %645
    %v647 = vsel %vm439, %v567, 0.0
    %648 = vadd.xlane.f32.xlu0 %v647
    %v649 = vpop.xlane.xlu0 %648
    %v650 = vsel %vm439, %v568, 0.0
    %651 = vadd.xlane.f32.xlu0 %v650
    %v652 = vpop.xlane.xlu0 %651
    %v653 = vsel %vm439, %v569, 0.0
    %654 = vadd.xlane.f32.xlu0 %v653
    %v655 = vpop.xlane.xlu0 %654
    %v656 = vsel %vm439, %v570, 0.0
    %657 = vadd.xlane.f32.xlu0 %v656
    %v658 = vpop.xlane.xlu0 %657
    %v659 = vsel %vm439, %v571, 0.0
    %660 = vadd.xlane.f32.xlu0 %v659
    %v661 = vpop.xlane.xlu0 %660
    %v662 = vsel %vm439, %v572, 0.0
    %663 = vadd.xlane.f32.xlu0 %v662
    %v664 = vpop.xlane.xlu0 %663
    %v665 = vsel %vm439, %v573, 0.0
    %666 = vadd.xlane.f32.xlu0 %v665
    %v667 = vpop.xlane.xlu0 %666
    %v668 = vsel %vm439, %v574, 0.0
    %669 = vadd.xlane.f32.xlu0 %v668
    %v670 = vpop.xlane.xlu0 %669
    %v671 = vld [vmem:[%s82] sm:$0x1]
    %v673 = vperm.slane %v671, 0
    %v675 = vadd.f32 %v577, %v673
    %v676 = vadd.f32 %v580, %v673
    %v677 = vadd.f32 %v583, %v673
    %v678 = vadd.f32 %v586, %v673
    %v679 = vadd.f32 %v589, %v673
    %v680 = vadd.f32 %v592, %v673
    %v681 = vadd.f32 %v595, %v673
    %v682 = vadd.f32 %v598, %v673
    %v683 = vadd.f32 %v601, %v673
    %v684 = vadd.f32 %v604, %v673
    %v685 = vadd.f32 %v607, %v673
    %v686 = vadd.f32 %v610, %v673
    %v687 = vadd.f32 %v613, %v673
    %v688 = vadd.f32 %v616, %v673
    %v689 = vadd.f32 %v619, %v673
    %v690 = vadd.f32 %v622, %v673
    %v691 = vadd.f32 %v625, %v673
    %v692 = vadd.f32 %v628, %v673
    %v693 = vadd.f32 %v631, %v673
    %v694 = vadd.f32 %v634, %v673
    %v695 = vadd.f32 %v637, %v673
    %v696 = vadd.f32 %v640, %v673
    %v697 = vadd.f32 %v643, %v673
    %v698 = vadd.f32 %v646, %v673
    %v699 = vadd.f32 %v649, %v673
    %v700 = vadd.f32 %v652, %v673
    %v701 = vadd.f32 %v655, %v673
    %v702 = vadd.f32 %v658, %v673
    %v703 = vadd.f32 %v661, %v673
    %v704 = vadd.f32 %v664, %v673
    %v705 = vadd.f32 %v667, %v673
    %v706 = vadd.f32 %v670, %v673
    %v707 = vsub.f32 0.0, %v675
    %v708 = vsub.f32 0.0, %v676
    %v709 = vsub.f32 0.0, %v677
    %v710 = vsub.f32 0.0, %v678
    %v711 = vsub.f32 0.0, %v679
    %v712 = vsub.f32 0.0, %v680
    %v713 = vsub.f32 0.0, %v681
    %v714 = vsub.f32 0.0, %v682
    %v715 = vsub.f32 0.0, %v683
    %v716 = vsub.f32 0.0, %v684
    %v717 = vsub.f32 0.0, %v685
    %v718 = vsub.f32 0.0, %v686
    %v719 = vsub.f32 0.0, %v687
    %v720 = vsub.f32 0.0, %v688
    %v721 = vsub.f32 0.0, %v689
    %v722 = vsub.f32 0.0, %v690
    %v723 = vsub.f32 0.0, %v691
    %v724 = vsub.f32 0.0, %v692
    %v725 = vsub.f32 0.0, %v693
    %v726 = vsub.f32 0.0, %v694
    %v727 = vsub.f32 0.0, %v695
    %v728 = vsub.f32 0.0, %v696
    %v729 = vsub.f32 0.0, %v697
    %v730 = vsub.f32 0.0, %v698
    %v731 = vsub.f32 0.0, %v699
    %v732 = vsub.f32 0.0, %v700
    %v733 = vsub.f32 0.0, %v701
    %v734 = vsub.f32 0.0, %v702
    %v735 = vsub.f32 0.0, %v703
    %v736 = vsub.f32 0.0, %v704
    %v737 = vsub.f32 0.0, %v705
    %v738 = vsub.f32 0.0, %v706
    %v739 = vmul.f32 %v707, 1.442695
    %v740 = vpow.pop %v739
    %v741 = vmul.f32 %v708, 1.442695
    %v742 = vpow.pop %v741
    %v743 = vmul.f32 %v709, 1.442695
    %v744 = vpow.pop %v743
    %v745 = vmul.f32 %v710, 1.442695
    %v746 = vpow.pop %v745
    %v747 = vmul.f32 %v711, 1.442695
    %v748 = vpow.pop %v747
    %v749 = vmul.f32 %v712, 1.442695
    %v750 = vpow.pop %v749
    %v751 = vmul.f32 %v713, 1.442695
    %v752 = vpow.pop %v751
    %v753 = vmul.f32 %v714, 1.442695
    %v754 = vpow.pop %v753
    %v755 = vmul.f32 %v715, 1.442695
    %v756 = vpow.pop %v755
    %v757 = vmul.f32 %v716, 1.442695
    %v758 = vpow.pop %v757
    %v759 = vmul.f32 %v717, 1.442695
    %v760 = vpow.pop %v759
    %v761 = vmul.f32 %v718, 1.442695
    %v762 = vpow.pop %v761
    %v763 = vmul.f32 %v719, 1.442695
    %v764 = vpow.pop %v763
    %v765 = vmul.f32 %v720, 1.442695
    %v766 = vpow.pop %v765
    %v767 = vmul.f32 %v721, 1.442695
    %v768 = vpow.pop %v767
    %v769 = vmul.f32 %v722, 1.442695
    %v770 = vpow.pop %v769
    %v771 = vmul.f32 %v723, 1.442695
    %v772 = vpow.pop %v771
    %v773 = vmul.f32 %v724, 1.442695
    %v774 = vpow.pop %v773
    %v775 = vmul.f32 %v725, 1.442695
    %v776 = vpow.pop %v775
    %v777 = vmul.f32 %v726, 1.442695
    %v778 = vpow.pop %v777
    %v779 = vmul.f32 %v727, 1.442695
    %v780 = vpow.pop %v779
    %v781 = vmul.f32 %v728, 1.442695
    %v782 = vpow.pop %v781
    %v783 = vmul.f32 %v729, 1.442695
    %v784 = vpow.pop %v783
    %v785 = vmul.f32 %v730, 1.442695
    %v786 = vpow.pop %v785
    %v787 = vmul.f32 %v731, 1.442695
    %v788 = vpow.pop %v787
    %v789 = vmul.f32 %v732, 1.442695
    %v790 = vpow.pop %v789
    %v791 = vmul.f32 %v733, 1.442695
    %v792 = vpow.pop %v791
    %v793 = vmul.f32 %v734, 1.442695
    %v794 = vpow.pop %v793
    %v795 = vmul.f32 %v735, 1.442695
    %v796 = vpow.pop %v795
    %v797 = vmul.f32 %v736, 1.442695
    %v798 = vpow.pop %v797
    %v799 = vmul.f32 %v737, 1.442695
    %v800 = vpow.pop %v799
    %v801 = vmul.f32 %v738, 1.442695
    %v802 = vpow.pop %v801
    %v803 = vadd.f32 %v740, 1.0
    %v804 = vadd.f32 %v742, 1.0
    %v805 = vadd.f32 %v744, 1.0
    %v806 = vadd.f32 %v746, 1.0
    %v807 = vadd.f32 %v748, 1.0
    %v808 = vadd.f32 %v750, 1.0
    %v809 = vadd.f32 %v752, 1.0
    %v810 = vadd.f32 %v754, 1.0
    %v811 = vadd.f32 %v756, 1.0
    %v812 = vadd.f32 %v758, 1.0
    %v813 = vadd.f32 %v760, 1.0
    %v814 = vadd.f32 %v762, 1.0
    %v815 = vadd.f32 %v764, 1.0
    %v816 = vadd.f32 %v766, 1.0
    %v817 = vadd.f32 %v768, 1.0
    %v818 = vadd.f32 %v770, 1.0
    %v819 = vadd.f32 %v772, 1.0
    %v820 = vadd.f32 %v774, 1.0
    %v821 = vadd.f32 %v776, 1.0
    %v822 = vadd.f32 %v778, 1.0
    %v823 = vadd.f32 %v780, 1.0
    %v824 = vadd.f32 %v782, 1.0
    %v825 = vadd.f32 %v784, 1.0
    %v826 = vadd.f32 %v786, 1.0
    %v827 = vadd.f32 %v788, 1.0
    %v828 = vadd.f32 %v790, 1.0
    %v829 = vadd.f32 %v792, 1.0
    %v830 = vadd.f32 %v794, 1.0
    %v831 = vadd.f32 %v796, 1.0
    %v832 = vadd.f32 %v798, 1.0
    %v833 = vadd.f32 %v800, 1.0
    %v834 = vadd.f32 %v802, 1.0
    %v835 = vrcp.pop %v803
    %v836 = vmul.f32 %v803, %v835
    %v837 = vsub.f32 1.0, %v836
    %v838 = vmul.f32 %v835, %v837
    %v839 = vadd.f32 %v835, %v838
    %vm840 = vweird.f32 %v803
    %vm841 = vweird.f32 %v835
    %vm842 = vmor %vm840, %vm841
    %v843 = vsel %vm842, %v835, %v839
    %v844 = vand.u32 2147483647, %v803
    %vm845 = vcmp.eq.f32.partialorder %v844, 8.507059e+37
    %v846 = vand.u32 %v803, 2147483648
    %v847 = vor.u32 1.1754944e-38, %v846
    %v848 = vsel %vm845, %v847, %v843
    %v849 = vrcp.pop %v804
    %v850 = vmul.f32 %v804, %v849
    %v851 = vsub.f32 1.0, %v850
    %v852 = vmul.f32 %v849, %v851
    %v853 = vadd.f32 %v849, %v852
    %vm854 = vweird.f32 %v804
    %vm855 = vweird.f32 %v849
    %vm856 = vmor %vm854, %vm855
    %v857 = vsel %vm856, %v849, %v853
    %v858 = vand.u32 2147483647, %v804
    %vm859 = vcmp.eq.f32.partialorder %v858, 8.507059e+37
    %v860 = vand.u32 %v804, 2147483648
    %v861 = vor.u32 1.1754944e-38, %v860
    %v862 = vsel %vm859, %v861, %v857
    %v863 = vrcp.pop %v805
    %v864 = vmul.f32 %v805, %v863
    %v865 = vsub.f32 1.0, %v864
    %v866 = vmul.f32 %v863, %v865
    %v867 = vadd.f32 %v863, %v866
    %vm868 = vweird.f32 %v805
    %vm869 = vweird.f32 %v863
    %vm870 = vmor %vm868, %vm869
    %v871 = vsel %vm870, %v863, %v867
    %v872 = vand.u32 2147483647, %v805
    %vm873 = vcmp.eq.f32.partialorder %v872, 8.507059e+37
    %v874 = vand.u32 %v805, 2147483648
    %v875 = vor.u32 1.1754944e-38, %v874
    %v876 = vsel %vm873, %v875, %v871
    %v877 = vrcp.pop %v806
    %v878 = vmul.f32 %v806, %v877
    %v879 = vsub.f32 1.0, %v878
    %v880 = vmul.f32 %v877, %v879
    %v881 = vadd.f32 %v877, %v880
    %vm882 = vweird.f32 %v806
    %vm883 = vweird.f32 %v877
    %vm884 = vmor %vm882, %vm883
    %v885 = vsel %vm884, %v877, %v881
    %v886 = vand.u32 2147483647, %v806
    %vm887 = vcmp.eq.f32.partialorder %v886, 8.507059e+37
    %v888 = vand.u32 %v806, 2147483648
    %v889 = vor.u32 1.1754944e-38, %v888
    %v890 = vsel %vm887, %v889, %v885
    %v891 = vrcp.pop %v807
    %v892 = vmul.f32 %v807, %v891
    %v893 = vsub.f32 1.0, %v892
    %v894 = vmul.f32 %v891, %v893
    %v895 = vadd.f32 %v891, %v894
    %vm896 = vweird.f32 %v807
    %vm897 = vweird.f32 %v891
    %vm898 = vmor %vm896, %vm897
    %v899 = vsel %vm898, %v891, %v895
    %v900 = vand.u32 2147483647, %v807
    %vm901 = vcmp.eq.f32.partialorder %v900, 8.507059e+37
    %v902 = vand.u32 %v807, 2147483648
    %v903 = vor.u32 1.1754944e-38, %v902
    %v904 = vsel %vm901, %v903, %v899
    %v905 = vrcp.pop %v808
    %v906 = vmul.f32 %v808, %v905
    %v907 = vsub.f32 1.0, %v906
    %v908 = vmul.f32 %v905, %v907
    %v909 = vadd.f32 %v905, %v908
    %vm910 = vweird.f32 %v808
    %vm911 = vweird.f32 %v905
    %vm912 = vmor %vm910, %vm911
    %v913 = vsel %vm912, %v905, %v909
    %v914 = vand.u32 2147483647, %v808
    %vm915 = vcmp.eq.f32.partialorder %v914, 8.507059e+37
    %v916 = vand.u32 %v808, 2147483648
    %v917 = vor.u32 1.1754944e-38, %v916
    %v918 = vsel %vm915, %v917, %v913
    %v919 = vrcp.pop %v809
    %v920 = vmul.f32 %v809, %v919
    %v921 = vsub.f32 1.0, %v920
    %v922 = vmul.f32 %v919, %v921
    %v923 = vadd.f32 %v919, %v922
    %vm924 = vweird.f32 %v809
    %vm925 = vweird.f32 %v919
    %vm926 = vmor %vm924, %vm925
    %v927 = vsel %vm926, %v919, %v923
    %v928 = vand.u32 2147483647, %v809
    %vm929 = vcmp.eq.f32.partialorder %v928, 8.507059e+37
    %v930 = vand.u32 %v809, 2147483648
    %v931 = vor.u32 1.1754944e-38, %v930
    %v932 = vsel %vm929, %v931, %v927
    %v933 = vrcp.pop %v810
    %v934 = vmul.f32 %v810, %v933
    %v935 = vsub.f32 1.0, %v934
    %v936 = vmul.f32 %v933, %v935
    %v937 = vadd.f32 %v933, %v936
    %vm938 = vweird.f32 %v810
    %vm939 = vweird.f32 %v933
    %vm940 = vmor %vm938, %vm939
    %v941 = vsel %vm940, %v933, %v937
    %v942 = vand.u32 2147483647, %v810
    %vm943 = vcmp.eq.f32.partialorder %v942, 8.507059e+37
    %v944 = vand.u32 %v810, 2147483648
    %v945 = vor.u32 1.1754944e-38, %v944
    %v946 = vsel %vm943, %v945, %v941
    %v947 = vrcp.pop %v811
    %v948 = vmul.f32 %v811, %v947
    %v949 = vsub.f32 1.0, %v948
    %v950 = vmul.f32 %v947, %v949
    %v951 = vadd.f32 %v947, %v950
    %vm952 = vweird.f32 %v811
    %vm953 = vweird.f32 %v947
    %vm954 = vmor %vm952, %vm953
    %v955 = vsel %vm954, %v947, %v951
    %v956 = vand.u32 2147483647, %v811
    %vm957 = vcmp.eq.f32.partialorder %v956, 8.507059e+37
    %v958 = vand.u32 %v811, 2147483648
    %v959 = vor.u32 1.1754944e-38, %v958
    %v960 = vsel %vm957, %v959, %v955
    %v961 = vrcp.pop %v812
    %v962 = vmul.f32 %v812, %v961
    %v963 = vsub.f32 1.0, %v962
    %v964 = vmul.f32 %v961, %v963
    %v965 = vadd.f32 %v961, %v964
    %vm966 = vweird.f32 %v812
    %vm967 = vweird.f32 %v961
    %vm968 = vmor %vm966, %vm967
    %v969 = vsel %vm968, %v961, %v965
    %v970 = vand.u32 2147483647, %v812
    %vm971 = vcmp.eq.f32.partialorder %v970, 8.507059e+37
    %v972 = vand.u32 %v812, 2147483648
    %v973 = vor.u32 1.1754944e-38, %v972
    %v974 = vsel %vm971, %v973, %v969
    %v975 = vrcp.pop %v813
    %v976 = vmul.f32 %v813, %v975
    %v977 = vsub.f32 1.0, %v976
    %v978 = vmul.f32 %v975, %v977
    %v979 = vadd.f32 %v975, %v978
    %vm980 = vweird.f32 %v813
    %vm981 = vweird.f32 %v975
    %vm982 = vmor %vm980, %vm981
    %v983 = vsel %vm982, %v975, %v979
    %v984 = vand.u32 2147483647, %v813
    %vm985 = vcmp.eq.f32.partialorder %v984, 8.507059e+37
    %v986 = vand.u32 %v813, 2147483648
    %v987 = vor.u32 1.1754944e-38, %v986
    %v988 = vsel %vm985, %v987, %v983
    %v989 = vrcp.pop %v814
    %v990 = vmul.f32 %v814, %v989
    %v991 = vsub.f32 1.0, %v990
    %v992 = vmul.f32 %v989, %v991
    %v993 = vadd.f32 %v989, %v992
    %vm994 = vweird.f32 %v814
    %vm995 = vweird.f32 %v989
    %vm996 = vmor %vm994, %vm995
    %v997 = vsel %vm996, %v989, %v993
    %v998 = vand.u32 2147483647, %v814
    %vm999 = vcmp.eq.f32.partialorder %v998, 8.507059e+37
    %v1000 = vand.u32 %v814, 2147483648
    %v1001 = vor.u32 1.1754944e-38, %v1000
    %v1002 = vsel %vm999, %v1001, %v997
    %v1003 = vrcp.pop %v815
    %v1004 = vmul.f32 %v815, %v1003
    %v1005 = vsub.f32 1.0, %v1004
    %v1006 = vmul.f32 %v1003, %v1005
    %v1007 = vadd.f32 %v1003, %v1006
    %vm1008 = vweird.f32 %v815
    %vm1009 = vweird.f32 %v1003
    %vm1010 = vmor %vm1008, %vm1009
    %v1011 = vsel %vm1010, %v1003, %v1007
    %v1012 = vand.u32 2147483647, %v815
    %vm1013 = vcmp.eq.f32.partialorder %v1012, 8.507059e+37
    %v1014 = vand.u32 %v815, 2147483648
    %v1015 = vor.u32 1.1754944e-38, %v1014
    %v1016 = vsel %vm1013, %v1015, %v1011
    %v1017 = vrcp.pop %v816
    %v1018 = vmul.f32 %v816, %v1017
    %v1019 = vsub.f32 1.0, %v1018
    %v1020 = vmul.f32 %v1017, %v1019
    %v1021 = vadd.f32 %v1017, %v1020
    %vm1022 = vweird.f32 %v816
    %vm1023 = vweird.f32 %v1017
    %vm1024 = vmor %vm1022, %vm1023
    %v1025 = vsel %vm1024, %v1017, %v1021
    %v1026 = vand.u32 2147483647, %v816
    %vm1027 = vcmp.eq.f32.partialorder %v1026, 8.507059e+37
    %v1028 = vand.u32 %v816, 2147483648
    %v1029 = vor.u32 1.1754944e-38, %v1028
    %v1030 = vsel %vm1027, %v1029, %v1025
    %v1031 = vrcp.pop %v817
    %v1032 = vmul.f32 %v817, %v1031
    %v1033 = vsub.f32 1.0, %v1032
    %v1034 = vmul.f32 %v1031, %v1033
    %v1035 = vadd.f32 %v1031, %v1034
    %vm1036 = vweird.f32 %v817
    %vm1037 = vweird.f32 %v1031
    %vm1038 = vmor %vm1036, %vm1037
    %v1039 = vsel %vm1038, %v1031, %v1035
    %v1040 = vand.u32 2147483647, %v817
    %vm1041 = vcmp.eq.f32.partialorder %v1040, 8.507059e+37
    %v1042 = vand.u32 %v817, 2147483648
    %v1043 = vor.u32 1.1754944e-38, %v1042
    %v1044 = vsel %vm1041, %v1043, %v1039
    %v1045 = vrcp.pop %v818
    %v1046 = vmul.f32 %v818, %v1045
    %v1047 = vsub.f32 1.0, %v1046
    %v1048 = vmul.f32 %v1045, %v1047
    %v1049 = vadd.f32 %v1045, %v1048
    %vm1050 = vweird.f32 %v818
    %vm1051 = vweird.f32 %v1045
    %vm1052 = vmor %vm1050, %vm1051
    %v1053 = vsel %vm1052, %v1045, %v1049
    %v1054 = vand.u32 2147483647, %v818
    %vm1055 = vcmp.eq.f32.partialorder %v1054, 8.507059e+37
    %v1056 = vand.u32 %v818, 2147483648
    %v1057 = vor.u32 1.1754944e-38, %v1056
    %v1058 = vsel %vm1055, %v1057, %v1053
    %v1059 = vrcp.pop %v819
    %v1060 = vmul.f32 %v819, %v1059
    %v1061 = vsub.f32 1.0, %v1060
    %v1062 = vmul.f32 %v1059, %v1061
    %v1063 = vadd.f32 %v1059, %v1062
    %vm1064 = vweird.f32 %v819
    %vm1065 = vweird.f32 %v1059
    %vm1066 = vmor %vm1064, %vm1065
    %v1067 = vsel %vm1066, %v1059, %v1063
    %v1068 = vand.u32 2147483647, %v819
    %vm1069 = vcmp.eq.f32.partialorder %v1068, 8.507059e+37
    %v1070 = vand.u32 %v819, 2147483648
    %v1071 = vor.u32 1.1754944e-38, %v1070
    %v1072 = vsel %vm1069, %v1071, %v1067
    %v1073 = vrcp.pop %v820
    %v1074 = vmul.f32 %v820, %v1073
    %v1075 = vsub.f32 1.0, %v1074
    %v1076 = vmul.f32 %v1073, %v1075
    %v1077 = vadd.f32 %v1073, %v1076
    %vm1078 = vweird.f32 %v820
    %vm1079 = vweird.f32 %v1073
    %vm1080 = vmor %vm1078, %vm1079
    %v1081 = vsel %vm1080, %v1073, %v1077
    %v1082 = vand.u32 2147483647, %v820
    %vm1083 = vcmp.eq.f32.partialorder %v1082, 8.507059e+37
    %v1084 = vand.u32 %v820, 2147483648
    %v1085 = vor.u32 1.1754944e-38, %v1084
    %v1086 = vsel %vm1083, %v1085, %v1081
    %v1087 = vrcp.pop %v821
    %v1088 = vmul.f32 %v821, %v1087
    %v1089 = vsub.f32 1.0, %v1088
    %v1090 = vmul.f32 %v1087, %v1089
    %v1091 = vadd.f32 %v1087, %v1090
    %vm1092 = vweird.f32 %v821
    %vm1093 = vweird.f32 %v1087
    %vm1094 = vmor %vm1092, %vm1093
    %v1095 = vsel %vm1094, %v1087, %v1091
    %v1096 = vand.u32 2147483647, %v821
    %vm1097 = vcmp.eq.f32.partialorder %v1096, 8.507059e+37
    %v1098 = vand.u32 %v821, 2147483648
    %v1099 = vor.u32 1.1754944e-38, %v1098
    %v1100 = vsel %vm1097, %v1099, %v1095
    %v1101 = vrcp.pop %v822
    %v1102 = vmul.f32 %v822, %v1101
    %v1103 = vsub.f32 1.0, %v1102
    %v1104 = vmul.f32 %v1101, %v1103
    %v1105 = vadd.f32 %v1101, %v1104
    %vm1106 = vweird.f32 %v822
    %vm1107 = vweird.f32 %v1101
    %vm1108 = vmor %vm1106, %vm1107
    %v1109 = vsel %vm1108, %v1101, %v1105
    %v1110 = vand.u32 2147483647, %v822
    %vm1111 = vcmp.eq.f32.partialorder %v1110, 8.507059e+37
    %v1112 = vand.u32 %v822, 2147483648
    %v1113 = vor.u32 1.1754944e-38, %v1112
    %v1114 = vsel %vm1111, %v1113, %v1109
    %v1115 = vrcp.pop %v823
    %v1116 = vmul.f32 %v823, %v1115
    %v1117 = vsub.f32 1.0, %v1116
    %v1118 = vmul.f32 %v1115, %v1117
    %v1119 = vadd.f32 %v1115, %v1118
    %vm1120 = vweird.f32 %v823
    %vm1121 = vweird.f32 %v1115
    %vm1122 = vmor %vm1120, %vm1121
    %v1123 = vsel %vm1122, %v1115, %v1119
    %v1124 = vand.u32 2147483647, %v823
    %vm1125 = vcmp.eq.f32.partialorder %v1124, 8.507059e+37
    %v1126 = vand.u32 %v823, 2147483648
    %v1127 = vor.u32 1.1754944e-38, %v1126
    %v1128 = vsel %vm1125, %v1127, %v1123
    %v1129 = vrcp.pop %v824
    %v1130 = vmul.f32 %v824, %v1129
    %v1131 = vsub.f32 1.0, %v1130
    %v1132 = vmul.f32 %v1129, %v1131
    %v1133 = vadd.f32 %v1129, %v1132
    %vm1134 = vweird.f32 %v824
    %vm1135 = vweird.f32 %v1129
    %vm1136 = vmor %vm1134, %vm1135
    %v1137 = vsel %vm1136, %v1129, %v1133
    %v1138 = vand.u32 2147483647, %v824
    %vm1139 = vcmp.eq.f32.partialorder %v1138, 8.507059e+37
    %v1140 = vand.u32 %v824, 2147483648
    %v1141 = vor.u32 1.1754944e-38, %v1140
    %v1142 = vsel %vm1139, %v1141, %v1137
    %v1143 = vrcp.pop %v825
    %v1144 = vmul.f32 %v825, %v1143
    %v1145 = vsub.f32 1.0, %v1144
    %v1146 = vmul.f32 %v1143, %v1145
    %v1147 = vadd.f32 %v1143, %v1146
    %vm1148 = vweird.f32 %v825
    %vm1149 = vweird.f32 %v1143
    %vm1150 = vmor %vm1148, %vm1149
    %v1151 = vsel %vm1150, %v1143, %v1147
    %v1152 = vand.u32 2147483647, %v825
    %vm1153 = vcmp.eq.f32.partialorder %v1152, 8.507059e+37
    %v1154 = vand.u32 %v825, 2147483648
    %v1155 = vor.u32 1.1754944e-38, %v1154
    %v1156 = vsel %vm1153, %v1155, %v1151
    %v1157 = vrcp.pop %v826
    %v1158 = vmul.f32 %v826, %v1157
    %v1159 = vsub.f32 1.0, %v1158
    %v1160 = vmul.f32 %v1157, %v1159
    %v1161 = vadd.f32 %v1157, %v1160
    %vm1162 = vweird.f32 %v826
    %vm1163 = vweird.f32 %v1157
    %vm1164 = vmor %vm1162, %vm1163
    %v1165 = vsel %vm1164, %v1157, %v1161
    %v1166 = vand.u32 2147483647, %v826
    %vm1167 = vcmp.eq.f32.partialorder %v1166, 8.507059e+37
    %v1168 = vand.u32 %v826, 2147483648
    %v1169 = vor.u32 1.1754944e-38, %v1168
    %v1170 = vsel %vm1167, %v1169, %v1165
    %v1171 = vrcp.pop %v827
    %v1172 = vmul.f32 %v827, %v1171
    %v1173 = vsub.f32 1.0, %v1172
    %v1174 = vmul.f32 %v1171, %v1173
    %v1175 = vadd.f32 %v1171, %v1174
    %vm1176 = vweird.f32 %v827
    %vm1177 = vweird.f32 %v1171
    %vm1178 = vmor %vm1176, %vm1177
    %v1179 = vsel %vm1178, %v1171, %v1175
    %v1180 = vand.u32 2147483647, %v827
    %vm1181 = vcmp.eq.f32.partialorder %v1180, 8.507059e+37
    %v1182 = vand.u32 %v827, 2147483648
    %v1183 = vor.u32 1.1754944e-38, %v1182
    %v1184 = vsel %vm1181, %v1183, %v1179
    %v1185 = vrcp.pop %v828
    %v1186 = vmul.f32 %v828, %v1185
    %v1187 = vsub.f32 1.0, %v1186
    %v1188 = vmul.f32 %v1185, %v1187
    %v1189 = vadd.f32 %v1185, %v1188
    %vm1190 = vweird.f32 %v828
    %vm1191 = vweird.f32 %v1185
    %vm1192 = vmor %vm1190, %vm1191
    %v1193 = vsel %vm1192, %v1185, %v1189
    %v1194 = vand.u32 2147483647, %v828
    %vm1195 = vcmp.eq.f32.partialorder %v1194, 8.507059e+37
    %v1196 = vand.u32 %v828, 2147483648
    %v1197 = vor.u32 1.1754944e-38, %v1196
    %v1198 = vsel %vm1195, %v1197, %v1193
    %v1199 = vrcp.pop %v829
    %v1200 = vmul.f32 %v829, %v1199
    %v1201 = vsub.f32 1.0, %v1200
    %v1202 = vmul.f32 %v1199, %v1201
    %v1203 = vadd.f32 %v1199, %v1202
    %vm1204 = vweird.f32 %v829
    %vm1205 = vweird.f32 %v1199
    %vm1206 = vmor %vm1204, %vm1205
    %v1207 = vsel %vm1206, %v1199, %v1203
    %v1208 = vand.u32 2147483647, %v829
    %vm1209 = vcmp.eq.f32.partialorder %v1208, 8.507059e+37
    %v1210 = vand.u32 %v829, 2147483648
    %v1211 = vor.u32 1.1754944e-38, %v1210
    %v1212 = vsel %vm1209, %v1211, %v1207
    %v1213 = vrcp.pop %v830
    %v1214 = vmul.f32 %v830, %v1213
    %v1215 = vsub.f32 1.0, %v1214
    %v1216 = vmul.f32 %v1213, %v1215
    %v1217 = vadd.f32 %v1213, %v1216
    %vm1218 = vweird.f32 %v830
    %vm1219 = vweird.f32 %v1213
    %vm1220 = vmor %vm1218, %vm1219
    %v1221 = vsel %vm1220, %v1213, %v1217
    %v1222 = vand.u32 2147483647, %v830
    %vm1223 = vcmp.eq.f32.partialorder %v1222, 8.507059e+37
    %v1224 = vand.u32 %v830, 2147483648
    %v1225 = vor.u32 1.1754944e-38, %v1224
    %v1226 = vsel %vm1223, %v1225, %v1221
    %v1227 = vrcp.pop %v831
    %v1228 = vmul.f32 %v831, %v1227
    %v1229 = vsub.f32 1.0, %v1228
    %v1230 = vmul.f32 %v1227, %v1229
    %v1231 = vadd.f32 %v1227, %v1230
    %vm1232 = vweird.f32 %v831
    %vm1233 = vweird.f32 %v1227
    %vm1234 = vmor %vm1232, %vm1233
    %v1235 = vsel %vm1234, %v1227, %v1231
    %v1236 = vand.u32 2147483647, %v831
    %vm1237 = vcmp.eq.f32.partialorder %v1236, 8.507059e+37
    %v1238 = vand.u32 %v831, 2147483648
    %v1239 = vor.u32 1.1754944e-38, %v1238
    %v1240 = vsel %vm1237, %v1239, %v1235
    %v1241 = vrcp.pop %v832
    %v1242 = vmul.f32 %v832, %v1241
    %v1243 = vsub.f32 1.0, %v1242
    %v1244 = vmul.f32 %v1241, %v1243
    %v1245 = vadd.f32 %v1241, %v1244
    %vm1246 = vweird.f32 %v832
    %vm1247 = vweird.f32 %v1241
    %vm1248 = vmor %vm1246, %vm1247
    %v1249 = vsel %vm1248, %v1241, %v1245
    %v1250 = vand.u32 2147483647, %v832
    %vm1251 = vcmp.eq.f32.partialorder %v1250, 8.507059e+37
    %v1252 = vand.u32 %v832, 2147483648
    %v1253 = vor.u32 1.1754944e-38, %v1252
    %v1254 = vsel %vm1251, %v1253, %v1249
    %v1255 = vrcp.pop %v833
    %v1256 = vmul.f32 %v833, %v1255
    %v1257 = vsub.f32 1.0, %v1256
    %v1258 = vmul.f32 %v1255, %v1257
    %v1259 = vadd.f32 %v1255, %v1258
    %vm1260 = vweird.f32 %v833
    %vm1261 = vweird.f32 %v1255
    %vm1262 = vmor %vm1260, %vm1261
    %v1263 = vsel %vm1262, %v1255, %v1259
    %v1264 = vand.u32 2147483647, %v833
    %vm1265 = vcmp.eq.f32.partialorder %v1264, 8.507059e+37
    %v1266 = vand.u32 %v833, 2147483648
    %v1267 = vor.u32 1.1754944e-38, %v1266
    %v1268 = vsel %vm1265, %v1267, %v1263
    %v1269 = vrcp.pop %v834
    %v1270 = vmul.f32 %v834, %v1269
    %v1271 = vsub.f32 1.0, %v1270
    %v1272 = vmul.f32 %v1269, %v1271
    %v1273 = vadd.f32 %v1269, %v1272
    %vm1274 = vweird.f32 %v834
    %vm1275 = vweird.f32 %v1269
    %vm1276 = vmor %vm1274, %vm1275
    %v1277 = vsel %vm1276, %v1269, %v1273
    %v1278 = vand.u32 2147483647, %v834
    %vm1279 = vcmp.eq.f32.partialorder %v1278, 8.507059e+37
    %v1280 = vand.u32 %v834, 2147483648
    %v1281 = vor.u32 1.1754944e-38, %v1280
    %v1282 = vsel %vm1279, %v1281, %v1277
    %v1283 = vsub.f32 1.0, %v848
    %v1284 = vsub.f32 1.0, %v862
    %v1285 = vsub.f32 1.0, %v876
    %v1286 = vsub.f32 1.0, %v890
    %v1287 = vsub.f32 1.0, %v904
    %v1288 = vsub.f32 1.0, %v918
    %v1289 = vsub.f32 1.0, %v932
    %v1290 = vsub.f32 1.0, %v946
    %v1291 = vsub.f32 1.0, %v960
    %v1292 = vsub.f32 1.0, %v974
    %v1293 = vsub.f32 1.0, %v988
    %v1294 = vsub.f32 1.0, %v1002
    %v1295 = vsub.f32 1.0, %v1016
    %v1296 = vsub.f32 1.0, %v1030
    %v1297 = vsub.f32 1.0, %v1044
    %v1298 = vsub.f32 1.0, %v1058
    %v1299 = vsub.f32 1.0, %v1072
    %v1300 = vsub.f32 1.0, %v1086
    %v1301 = vsub.f32 1.0, %v1100
    %v1302 = vsub.f32 1.0, %v1114
    %v1303 = vsub.f32 1.0, %v1128
    %v1304 = vsub.f32 1.0, %v1142
    %v1305 = vsub.f32 1.0, %v1156
    %v1306 = vsub.f32 1.0, %v1170
    %v1307 = vsub.f32 1.0, %v1184
    %v1308 = vsub.f32 1.0, %v1198
    %v1309 = vsub.f32 1.0, %v1212
    %v1310 = vsub.f32 1.0, %v1226
    %v1311 = vsub.f32 1.0, %v1240
    %v1312 = vsub.f32 1.0, %v1254
    %v1313 = vsub.f32 1.0, %v1268
    %v1314 = vsub.f32 1.0, %v1282
    %vm1315 = vcmask 7168
    %1316 = vst.msk [vmem:[%s6] sm:$0xff] %vm1315, %v1283
    %1317 = vst.msk [vmem:[%s6 + $0x8] sm:$0xff] %vm1315, %v1284
    %1318 = vst.msk [vmem:[%s6 + $0x10] sm:$0xff] %vm1315, %v1285
    %1319 = vst.msk [vmem:[%s6 + $0x18] sm:$0xff] %vm1315, %v1286
    %1320 = vst.msk [vmem:[%s6 + $0x20] sm:$0xff] %vm1315, %v1287
    %1321 = vst.msk [vmem:[%s6 + $0x28] sm:$0xff] %vm1315, %v1288
    %1322 = vst.msk [vmem:[%s6 + $0x30] sm:$0xff] %vm1315, %v1289
    %1323 = vst.msk [vmem:[%s6 + $0x38] sm:$0xff] %vm1315, %v1290
    %1324 = vst.msk [vmem:[%s6 + $0x40] sm:$0xff] %vm1315, %v1291
    %1325 = vst.msk [vmem:[%s6 + $0x48] sm:$0xff] %vm1315, %v1292
    %1326 = vst.msk [vmem:[%s6 + $0x50] sm:$0xff] %vm1315, %v1293
    %1327 = vst.msk [vmem:[%s6 + $0x58] sm:$0xff] %vm1315, %v1294
    %1328 = vst.msk [vmem:[%s6 + $0x60] sm:$0xff] %vm1315, %v1295
    %1329 = vst.msk [vmem:[%s6 + $0x68] sm:$0xff] %vm1315, %v1296
    %1330 = vst.msk [vmem:[%s6 + $0x70] sm:$0xff] %vm1315, %v1297
    %1331 = vst.msk [vmem:[%s6 + $0x78] sm:$0xff] %vm1315, %v1298
    %1332 = vst.msk [vmem:[%s6 + $0x80] sm:$0xff] %vm1315, %v1299
    %1333 = vst.msk [vmem:[%s6 + $0x88] sm:$0xff] %vm1315, %v1300
    %1334 = vst.msk [vmem:[%s6 + $0x90] sm:$0xff] %vm1315, %v1301
    %1335 = vst.msk [vmem:[%s6 + $0x98] sm:$0xff] %vm1315, %v1302
    %1336 = vst.msk [vmem:[%s6 + $0xa0] sm:$0xff] %vm1315, %v1303
    %1337 = vst.msk [vmem:[%s6 + $0xa8] sm:$0xff] %vm1315, %v1304
    %1338 = vst.msk [vmem:[%s6 + $0xb0] sm:$0xff] %vm1315, %v1305
    %1339 = vst.msk [vmem:[%s6 + $0xb8] sm:$0xff] %vm1315, %v1306
    %1340 = vst.msk [vmem:[%s6 + $0xc0] sm:$0xff] %vm1315, %v1307
    %1341 = vst.msk [vmem:[%s6 + $0xc8] sm:$0xff] %vm1315, %v1308
    %1342 = vst.msk [vmem:[%s6 + $0xd0] sm:$0xff] %vm1315, %v1309
    %1343 = vst.msk [vmem:[%s6 + $0xd8] sm:$0xff] %vm1315, %v1310
    %1344 = vst.msk [vmem:[%s6 + $0xe0] sm:$0xff] %vm1315, %v1311
    %1345 = vst.msk [vmem:[%s6 + $0xe8] sm:$0xff] %vm1315, %v1312
    %1346 = vst.msk [vmem:[%s6 + $0xf0] sm:$0xff] %vm1315, %v1313
    %1347 = vst.msk [vmem:[%s6 + $0xf8] sm:$0xff] %vm1315, %v1314
    %1380 = vrot.lane.b32.xlu0 %v848, 1
    %v1381 = vpop.permute.xlu0 %1380
    %1382 = vrot.lane.b32.xlu0 %v862, 1
    %v1383 = vpop.permute.xlu0 %1382
    %1384 = vrot.lane.b32.xlu0 %v876, 1
    %v1385 = vpop.permute.xlu0 %1384
    %1386 = vrot.lane.b32.xlu0 %v890, 1
    %v1387 = vpop.permute.xlu0 %1386
    %1388 = vrot.lane.b32.xlu0 %v904, 1
    %v1389 = vpop.permute.xlu0 %1388
    %1390 = vrot.lane.b32.xlu0 %v918, 1
    %v1391 = vpop.permute.xlu0 %1390
    %1392 = vrot.lane.b32.xlu0 %v932, 1
    %v1393 = vpop.permute.xlu0 %1392
    %1394 = vrot.lane.b32.xlu0 %v946, 1
    %v1395 = vpop.permute.xlu0 %1394
    %1396 = vrot.lane.b32.xlu0 %v960, 1
    %v1397 = vpop.permute.xlu0 %1396
    %1398 = vrot.lane.b32.xlu0 %v974, 1
    %v1399 = vpop.permute.xlu0 %1398
    %1400 = vrot.lane.b32.xlu0 %v988, 1
    %v1401 = vpop.permute.xlu0 %1400
    %1402 = vrot.lane.b32.xlu0 %v1002, 1
    %v1403 = vpop.permute.xlu0 %1402
    %1404 = vrot.lane.b32.xlu0 %v1016, 1
    %v1405 = vpop.permute.xlu0 %1404
    %1406 = vrot.lane.b32.xlu0 %v1030, 1
    %v1407 = vpop.permute.xlu0 %1406
    %1408 = vrot.lane.b32.xlu0 %v1044, 1
    %v1409 = vpop.permute.xlu0 %1408
    %1410 = vrot.lane.b32.xlu0 %v1058, 1
    %v1411 = vpop.permute.xlu0 %1410
    %1412 = vrot.lane.b32.xlu0 %v1072, 1
    %v1413 = vpop.permute.xlu0 %1412
    %1414 = vrot.lane.b32.xlu0 %v1086, 1
    %v1415 = vpop.permute.xlu0 %1414
    %1416 = vrot.lane.b32.xlu0 %v1100, 1
    %v1417 = vpop.permute.xlu0 %1416
    %1418 = vrot.lane.b32.xlu0 %v1114, 1
    %v1419 = vpop.permute.xlu0 %1418
    %1420 = vrot.lane.b32.xlu0 %v1128, 1
    %v1421 = vpop.permute.xlu0 %1420
    %1422 = vrot.lane.b32.xlu0 %v1142, 1
    %v1423 = vpop.permute.xlu0 %1422
    %1424 = vrot.lane.b32.xlu0 %v1156, 1
    %v1425 = vpop.permute.xlu0 %1424
    %1426 = vrot.lane.b32.xlu0 %v1170, 1
    %v1427 = vpop.permute.xlu0 %1426
    %1428 = vrot.lane.b32.xlu0 %v1184, 1
    %v1429 = vpop.permute.xlu0 %1428
    %1430 = vrot.lane.b32.xlu0 %v1198, 1
    %v1431 = vpop.permute.xlu0 %1430
    %1432 = vrot.lane.b32.xlu0 %v1212, 1
    %v1433 = vpop.permute.xlu0 %1432
    %1434 = vrot.lane.b32.xlu0 %v1226, 1
    %v1435 = vpop.permute.xlu0 %1434
    %1436 = vrot.lane.b32.xlu0 %v1240, 1
    %v1437 = vpop.permute.xlu0 %1436
    %1438 = vrot.lane.b32.xlu0 %v1254, 1
    %v1439 = vpop.permute.xlu0 %1438
    %1440 = vrot.lane.b32.xlu0 %v1268, 1
    %v1441 = vpop.permute.xlu0 %1440
    %1442 = vrot.lane.b32.xlu0 %v1282, 1
    %v1443 = vpop.permute.xlu0 %1442
    %vm1476 = vcmask 15368
    %1477 = vst.msk [vmem:[%s6] sm:$0xff] %vm1476, %v1381
    %1478 = vst.msk [vmem:[%s6 + $0x8] sm:$0xff] %vm1476, %v1383
    %1479 = vst.msk [vmem:[%s6 + $0x10] sm:$0xff] %vm1476, %v1385
    %1480 = vst.msk [vmem:[%s6 + $0x18] sm:$0xff] %vm1476, %v1387
    %1481 = vst.msk [vmem:[%s6 + $0x20] sm:$0xff] %vm1476, %v1389
    %1482 = vst.msk [vmem:[%s6 + $0x28] sm:$0xff] %vm1476, %v1391
    %1483 = vst.msk [vmem:[%s6 + $0x30] sm:$0xff] %vm1476, %v1393
    %1484 = vst.msk [vmem:[%s6 + $0x38] sm:$0xff] %vm1476, %v1395
    %1485 = vst.msk [vmem:[%s6 + $0x40] sm:$0xff] %vm1476, %v1397
    %1486 = vst.msk [vmem:[%s6 + $0x48] sm:$0xff] %vm1476, %v1399
    %1487 = vst.msk [vmem:[%s6 + $0x50] sm:$0xff] %vm1476, %v1401
    %1488 = vst.msk [vmem:[%s6 + $0x58] sm:$0xff] %vm1476, %v1403
    %1489 = vst.msk [vmem:[%s6 + $0x60] sm:$0xff] %vm1476, %v1405
    %1490 = vst.msk [vmem:[%s6 + $0x68] sm:$0xff] %vm1476, %v1407
    %1491 = vst.msk [vmem:[%s6 + $0x70] sm:$0xff] %vm1476, %v1409
    %1492 = vst.msk [vmem:[%s6 + $0x78] sm:$0xff] %vm1476, %v1411
    %1493 = vst.msk [vmem:[%s6 + $0x80] sm:$0xff] %vm1476, %v1413
    %1494 = vst.msk [vmem:[%s6 + $0x88] sm:$0xff] %vm1476, %v1415
    %1495 = vst.msk [vmem:[%s6 + $0x90] sm:$0xff] %vm1476, %v1417
    %1496 = vst.msk [vmem:[%s6 + $0x98] sm:$0xff] %vm1476, %v1419
    %1497 = vst.msk [vmem:[%s6 + $0xa0] sm:$0xff] %vm1476, %v1421
    %1498 = vst.msk [vmem:[%s6 + $0xa8] sm:$0xff] %vm1476, %v1423
    %1499 = vst.msk [vmem:[%s6 + $0xb0] sm:$0xff] %vm1476, %v1425
    %1500 = vst.msk [vmem:[%s6 + $0xb8] sm:$0xff] %vm1476, %v1427
    %1501 = vst.msk [vmem:[%s6 + $0xc0] sm:$0xff] %vm1476, %v1429
    %1502 = vst.msk [vmem:[%s6 + $0xc8] sm:$0xff] %vm1476, %v1431
    %1503 = vst.msk [vmem:[%s6 + $0xd0] sm:$0xff] %vm1476, %v1433
    %1504 = vst.msk [vmem:[%s6 + $0xd8] sm:$0xff] %vm1476, %v1435
    %1505 = vst.msk [vmem:[%s6 + $0xe0] sm:$0xff] %vm1476, %v1437
    %1506 = vst.msk [vmem:[%s6 + $0xe8] sm:$0xff] %vm1476, %v1439
    %1507 = vst.msk [vmem:[%s6 + $0xf0] sm:$0xff] %vm1476, %v1441
    %1508 = vst.msk [vmem:[%s6 + $0xf8] sm:$0xff] %vm1476, %v1443
  $region29: #{tpu_custom_call.1} parent=0 // pred_fallthru
    _
  // Predicated region
  $region30: #{tpu_custom_call.1} parent=0 // pred_check
    _
  $region31: #{tpu_custom_call.1} parent=0 // pred_check_branch
    %1510 = sbr.rel (0) target = $region33
  $region32: #{tpu_custom_call.1} parent=0 // pred_region
    _
  $region33: #{tpu_custom_call.1} parent=0 // pred_fallthru
    _
  // Predicated region
  $region34: #{tpu_custom_call.1} parent=0 // pred_check
    _
  $region35: #{tpu_custom_call.1} parent=0 // pred_check_branch
    %1512 = sbr.rel (0) target = $region37
  $region36: #{tpu_custom_call.1} parent=0 // pred_region
    _
  $region37: #{tpu_custom_call.1} parent=0 // pred_fallthru
    _

</llo_original>
